<compile_context>
chip_gen: v6e
topology: v6e:2x2x1
jax: 0.10.0
libtpu: 0.0.40
codegen_flags: <defaults>
</compile_context>

<pallas_src>
import functools

import jax
import jax.numpy as jnp
from jax.experimental import pallas as pl
from jax.experimental.pallas import tpu as pltpu


def _round_up(a, m):
    return ((a + m - 1) // m) * m


# ----------------------------------------------------------------------------
# Pallas kernel (one batch tile of TB rows per grid step)
# ----------------------------------------------------------------------------
def _latent_gm_kernel(
    x_ref,       # (TB, H)      encoder output tile (bf16)
    eps_ref,     # (TB, H)      reparameterization noise tile (f32)
    w_ref,       # (H, 2H)      fused [fc_mu_z | fc_sigma_z] weight (bf16, resident)
    b_ref,       # (1, 2H)      fused bias (f32, resident)
    invcT_ref,   # (H, Kp)      exp(-log_sigma_sq_c).T            (bf16, resident)
    mciT_ref,    # (H, Kp)      (mu_c * exp(-log_sigma_sq_c)).T   (bf16, resident)
    kconst_ref,  # (2, Kp)      row0 = sum_h mu_c^2*inv, row1 = sum_h log_sigma_sq_c (f32)
    z_ref,       # (TB, H)      out: sampled latent (f32)
    gl_ref,      # (1, 1, TB)   out: per-example gaussian loss (lane-dense)
    pi_ref,      # (1, 1, Kp)   out: per-tile sum over rows of pi_post
    *,
    K,           # true number of mixture components (static)
    B_true,      # true (unpadded) batch size (static)
):
    TB, H = eps_ref.shape
    Kp = invcT_ref.shape[1]
    inv_H = 1.0 / float(H)

    # ---- fused linear layers: one bf16 MXU matmul, f32 accumulate ----------
    lin = jnp.dot(x_ref[...], w_ref[...],
                  preferred_element_type=jnp.float32) + b_ref[...]      # (TB, 2H)
    mu_z = lin[:, :H]
    log_sigma_sq_z = lin[:, H:]

    # ---- reparameterization sample; reuse s for exp(lssz) = s*s -------------
    s = jnp.exp(0.5 * log_sigma_sq_z)            # single full-tile EUP exp
    z = mu_z + s * eps_ref[...]
    z_ref[...] = z.astype(z_ref.dtype)
    exp_lssz = s * s                             # VPU mul instead of a second exp

    invcT = invcT_ref[...]          # (H, Kp) bf16
    mciT = mciT_ref[...]            # (H, Kp) bf16
    c2 = kconst_ref[0:1, :]         # (1, Kp)  sum_h mu_c^2 * exp(-lssc)  (f32)
    lssc_sum = kconst_ref[1:2, :]   # (1, Kp)  sum_h log_sigma_sq_c       (f32)

    # ---- bf16 MXU operands: square in f32, cast only the matmul inputs -----
    zsq_bf = (z * z).astype(jnp.bfloat16)
    musq_bf = (mu_z * mu_z).astype(jnp.bfloat16)
    els_bf = exp_lssz.astype(jnp.bfloat16)
    z_bf = z.astype(jnp.bfloat16)
    mu_bf = mu_z.astype(jnp.bfloat16)

    # ---- merged mixture matmuls (2 weight loads instead of 5) --------------
    dots_inv = jnp.dot(jnp.concatenate([zsq_bf, els_bf, musq_bf], axis=0), invcT,
                       preferred_element_type=jnp.float32)               # (3TB, Kp)
    zsq_dot = dots_inv[:TB]
    exp_dot = dots_inv[TB:2 * TB]
    musq_dot = dots_inv[2 * TB:]

    dots_mci = jnp.dot(jnp.concatenate([z_bf, mu_bf], axis=0), mciT,
                       preferred_element_type=jnp.float32)               # (2TB, Kp)
    z_dot = dots_mci[:TB]
    mu_dot = dots_mci[TB:]

    # ---- posterior logits via expanded squares (f32 epilogue) ---------------
    #   -sum_h (z - mu_c)^2 / sigma_c^2
    #     = -( (z*z) @ inv.T - 2 * z @ (mu_c*inv).T + sum_h mu_c^2*inv )
    logits = -(zsq_dot - 2.0 * z_dot + c2)

    # mask out padded components (K..Kp-1); keep mask value / softmax in f32
    kmask = jax.lax.broadcasted_iota(jnp.int32, (1, Kp), 1) < K
    logits = jnp.where(kmask, logits, -1e30)

    m = jnp.max(logits, axis=-1, keepdims=True)
    e = jnp.exp(logits - m)
    denom = jnp.sum(e, axis=-1, keepdims=True)
    pi_post = e * pl.reciprocal(denom, approx=True)
    pi_post = jnp.where(kmask, pi_post + 1e-10, 0.0)                     # (TB, Kp)

    # ---- gaussian loss via the same matmul results ---------------------------
    #   mean_h( lssc + exp(lssz)*inv + (mu_z - mu_c)^2 * inv )
    term_mean = (lssc_sum + exp_dot + musq_dot - 2.0 * mu_dot + c2) * inv_H

    gl = (0.5 * jnp.sum(pi_post * term_mean, axis=-1)
          - 0.5 * (1.0 + jnp.sum(log_sigma_sq_z, axis=-1) * inv_H))      # (TB,)
    gl_ref[...] = gl.reshape(1, 1, TB).astype(gl_ref.dtype)              # lane-dense

    # ---- per-tile partial sum of pi_post (uniform loss finished outside) ----
    rows = pl.program_id(0) * TB + jax.lax.broadcasted_iota(jnp.int32, (TB, 1), 0)
    row_valid = (rows < B_true).astype(jnp.float32)       # mask padded batch rows
    pi_sum = jnp.sum(pi_post * row_valid, axis=0, keepdims=True)         # (1, Kp)
    pi_ref[...] = pi_sum.reshape(1, 1, Kp)


# ----------------------------------------------------------------------------
# Wrapper
# ----------------------------------------------------------------------------
@functools.partial(jax.jit, static_argnames=("tb",))
def latent_gaussian_mixture(x, w_mu, b_mu, w_sigma, b_sigma, mu_c,
                            log_sigma_sq_c, eps, *, tb=1024):
    B, H = x.shape
    K = mu_c.shape[0]
    Kp = _round_up(max(K, 1), 128)          # pad components to full lane width

    # Tile size: >= 2 grid steps whenever B allows it (keeps both v7x
    # TensorCores busy on the "parallel" batch axis), multiple of 16 for bf16
    # sublane packing, capped at tb.  Padding is bounded by one tile.
    half = -(-B // 2)                       # cdiv(B, 2)
    TB = _round_up(max(min(tb, half), 16), 16)
    Bp = _round_up(B, TB)
    num_tiles = Bp // TB

    # --- fused linear parameters (bf16 for the MXU; f32 bias) ---------------
    w_fused = jnp.concatenate([w_mu, w_sigma], axis=1).astype(jnp.bfloat16)   # (H, 2H)
    b_fused = jnp.concatenate([b_mu, b_sigma]).reshape(1, 2 * H).astype(jnp.float32)

    # --- hoisted mixture constants, padded on the component axis ------------
    pad_k = Kp - K
    mu_c_p = jnp.pad(mu_c, ((0, pad_k), (0, 0)))
    lssc_p = jnp.pad(log_sigma_sq_c, ((0, pad_k), (0, 0)))
    inv_c = jnp.exp(-lssc_p)                                    # (Kp, H)
    invcT = inv_c.T.astype(jnp.bfloat16)                        # (H, Kp)  bf16 MXU weight
    mciT = (mu_c_p * inv_c).T.astype(jnp.bfloat16)              # (H, Kp)  bf16 MXU weight
    c2 = jnp.sum(mu_c_p * mu_c_p * inv_c, axis=1)               # (Kp,)    f32
    lssc_sum = jnp.sum(lssc_p, axis=1)                          # (Kp,)    f32
    kconst = jnp.stack([c2, lssc_sum], axis=0).astype(jnp.float32)  # (2, Kp)

    # --- batch padding to a multiple of the tile (cast first, pad bf16) -----
    x_p = jnp.pad(x.astype(jnp.bfloat16), ((0, Bp - B), (0, 0)))
    eps_p = jnp.pad(eps.astype(jnp.float32), ((0, Bp - B), (0, 0)))

    kernel = functools.partial(_latent_gm_kernel, K=K, B_true=B)

    out_shapes = (
        jax.ShapeDtypeStruct((Bp, H), jnp.float32),               # z
        jax.ShapeDtypeStruct((num_tiles, 1, TB), jnp.float32),    # gaussian loss (lane-dense)
        jax.ShapeDtypeStruct((num_tiles, 1, Kp), jnp.float32),    # per-tile pi_post sums
    )

    grid_spec = pltpu.PrefetchScalarGridSpec(
        num_scalar_prefetch=0,
        grid=(num_tiles,),
        in_specs=[
            pl.BlockSpec((TB, H), lambda i: (i, 0)),         # x tile
            pl.BlockSpec((TB, H), lambda i: (i, 0)),         # eps tile
            pl.BlockSpec((H, 2 * H), lambda i: (0, 0)),      # fused weight (resident)
            pl.BlockSpec((1, 2 * H), lambda i: (0, 0)),      # fused bias   (resident)
            pl.BlockSpec((H, Kp), lambda i: (0, 0)),         # exp(-lssc).T (resident, bf16)
            pl.BlockSpec((H, Kp), lambda i: (0, 0)),         # (mu_c*inv).T (resident, bf16)
            pl.BlockSpec((2, Kp), lambda i: (0, 0)),         # [c2; sum lssc]
        ],
        out_specs=(
            pl.BlockSpec((TB, H), lambda i: (i, 0)),         # z
            pl.BlockSpec((1, 1, TB), lambda i: (i, 0, 0)),   # gaussian loss (lane-dense)
            pl.BlockSpec((1, 1, Kp), lambda i: (i, 0, 0)),   # pi_post partial sums
        ),
    )

    z_p, gl_p, pi_sums = pl.pallas_call(
        kernel,
        out_shape=out_shapes,
        grid_spec=grid_spec,
        compiler_params=pltpu.CompilerParams(
            dimension_semantics=("parallel",),      # batch tiles are independent
        ),
    )(x_p, eps_p, w_fused, b_fused, invcT, mciT, kconst)

    z = z_p[:B]
    gaussian_loss = gl_p.reshape(Bp)[:B]
    # finish the uniform loss from the per-tile partial sums (keeps the batch
    # grid axis fully parallel inside the kernel)
    pbar = jnp.sum(pi_sums, axis=(0, 1))[:K] / B
    uniform_loss = jnp.mean(pbar * jnp.log(pbar))
    return z, gaussian_loss, uniform_loss


# ----------------------------------------------------------------------------
# Pure-JAX reference (mirrors the PyTorch forward with return_loss=True).
# use_bf16=True matches the kernel's bf16 MXU inputs for the two linears;
# the mixture math stays in f32 (the kernel's bf16 mixture matmuls introduce
# a small extra error, covered by the looser gl/ul tolerances below).
# ----------------------------------------------------------------------------
def reference(x, w_mu, b_mu, w_sigma, b_sigma, mu_c, log_sigma_sq_c, eps,
              use_bf16=True):
    if use_bf16:
        xl = x.astype(jnp.bfloat16)
        wm = w_mu.astype(jnp.bfloat16)
        ws = w_sigma.astype(jnp.bfloat16)
    else:
        xl, wm, ws = x, w_mu, w_sigma
    mu_z = jnp.dot(xl, wm, preferred_element_type=jnp.float32) + b_mu
    lssz = jnp.dot(xl, ws, preferred_element_type=jnp.float32) + b_sigma
    z = mu_z + jnp.exp(0.5 * lssz) * eps
    inv_sc = jnp.exp(-log_sigma_sq_c)
    diff_z = z[:, None, :] - mu_c[None, :, :]
    logits = -jnp.sum(diff_z ** 2 * inv_sc[None], axis=-1)
    pi_post = jax.nn.softmax(logits, axis=-1) + 1e-10
    diff_mu = mu_z[:, None, :] - mu_c[None, :, :]
    term = (log_sigma_sq_c[None] + jnp.exp(lssz)[:, None, :] * inv_sc[None]
            + diff_mu ** 2 * inv_sc[None])
    gl = (0.5 * jnp.sum(pi_post * jnp.mean(term, axis=-1), axis=-1)
          - 0.5 * jnp.mean(1.0 + lssz, axis=-1))
    pbar = jnp.mean(pi_post, axis=0)
    ul = jnp.mean(pbar * jnp.log(pbar))
    return z, gl, ul


# ----------------------------------------------------------------------------
# Demo
# ----------------------------------------------------------------------------
if __name__ == "__main__":
    B = 200          # batch; not a tile multiple -> exercises padding/row masking
    DIM_H = 128      # dim_h (small, lane-aligned)
    K = 10           # mixture components

    key = jax.random.PRNGKey(0)
    k_x, k_wm, k_bm, k_ws, k_bs, k_mc, k_eps = jax.random.split(key, 7)

    # deterministic synthetic parameters (shapes from the module __init__);
    # Linear weights are pre-transposed to (in, out).
    x = jax.random.normal(k_x, (B, DIM_H), dtype=jnp.float32)
    w_mu = jax.random.normal(k_wm, (DIM_H, DIM_H), dtype=jnp.float32) * 0.05
    b_mu = jax.random.normal(k_bm, (DIM_H,), dtype=jnp.float32) * 0.05
    w_sigma = jax.random.normal(k_ws, (DIM_H, DIM_H), dtype=jnp.float32) * 0.05
    b_sigma = jax.random.normal(k_bs, (DIM_H,), dtype=jnp.float32) * 0.05
    mu_c = jax.random.normal(k_mc, (K, DIM_H), dtype=jnp.float32)          # randn init
    log_sigma_sq_c = jnp.zeros((K, DIM_H), dtype=jnp.float32)              # zeros init
    # TODO(synk): torch.randn_like noise is generated host-side with jax.random
    # and passed in (keeps the kernel a pure function of its arguments).
    eps = jax.random.normal(k_eps, (B, DIM_H), dtype=jnp.float32)

    z, gl, ul = latent_gaussian_mixture(
        x, w_mu, b_mu, w_sigma, b_sigma, mu_c, log_sigma_sq_c, eps)
    jax.block_until_ready((z, gl, ul))

    z_r, gl_r, ul_r = reference(
        x, w_mu, b_mu, w_sigma, b_sigma, mu_c, log_sigma_sq_c, eps, use_bf16=True)

    assert z.shape == (B, DIM_H) and gl.shape == (B,)
    # z path is identical precision to the reference (bf16 linears only).
    assert jnp.allclose(z, z_r, rtol=1e-3, atol=1e-3), "z mismatch"
    # gl / ul tolerate the kernel's bf16 mixture matmuls + approx reciprocal.
    assert jnp.allclose(gl, gl_r, rtol=5e-2, atol=5e-2), "gaussian loss mismatch"
    assert jnp.allclose(ul, ul_r, rtol=5e-2, atol=5e-2), "uniform loss mismatch"

    print("KERNEL_OK")
</pallas_src>

<mosaic_0001>
module attributes {stable_mosaic.version = 11 : i64} {
  func.func @_latent_gm_kernel(%arg0: i32, %arg1: memref<112x128xbf16, #tpu.memory_space<vmem>>, %arg2: memref<112x128xf32, #tpu.memory_space<vmem>>, %arg3: memref<128x256xbf16, #tpu.memory_space<vmem>>, %arg4: memref<1x256xf32, #tpu.memory_space<vmem>>, %arg5: memref<128x128xbf16, #tpu.memory_space<vmem>>, %arg6: memref<128x128xbf16, #tpu.memory_space<vmem>>, %arg7: memref<2x128xf32, #tpu.memory_space<vmem>>, %arg8: memref<112x128xf32, #tpu.memory_space<vmem>>, %arg9: memref<1x1x112xf32, #tpu.memory_space<vmem>>, %arg10: memref<1x1x128xf32, #tpu.memory_space<vmem>>) attributes {dimension_semantics = [#tpu.dimension_semantics<parallel>], iteration_bounds = array<i64: 2>, scalar_prefetch = 0 : i64, scratch_operands = 0 : i64, tpu.core_type = #tpu.core_type<tc>, window_params = [{transform_indices = @transform_0, window_bounds = array<i64: 112, 128>}, {transform_indices = @transform_1, window_bounds = array<i64: 112, 128>}, {pipeline_mode = #tpu.pipeline_mode<synchronous>, transform_indices = @transform_2, window_bounds = array<i64: 128, 256>}, {pipeline_mode = #tpu.pipeline_mode<synchronous>, transform_indices = @transform_3, window_bounds = array<i64: 1, 256>}, {pipeline_mode = #tpu.pipeline_mode<synchronous>, transform_indices = @transform_4, window_bounds = array<i64: 128, 128>}, {pipeline_mode = #tpu.pipeline_mode<synchronous>, transform_indices = @transform_5, window_bounds = array<i64: 128, 128>}, {pipeline_mode = #tpu.pipeline_mode<synchronous>, transform_indices = @transform_6, window_bounds = array<i64: 2, 128>}, {transform_indices = @transform_7, window_bounds = array<i64: 112, 128>}, {transform_indices = @transform_8, window_bounds = array<i64: 1, 1, 112>}, {transform_indices = @transform_9, window_bounds = array<i64: 1, 1, 128>}]} {
    %c0 = arith.constant 0 : index
    %c0_0 = arith.constant 0 : index
    %0 = vector.load %arg1[%c0, %c0_0] : memref<112x128xbf16, #tpu.memory_space<vmem>>, vector<112x128xbf16>
    %c0_1 = arith.constant 0 : index
    %c0_2 = arith.constant 0 : index
    %1 = vector.load %arg3[%c0_1, %c0_2] : memref<128x256xbf16, #tpu.memory_space<vmem>>, vector<128x256xbf16>
    %cst = arith.constant dense<0.000000e+00> : vector<112x256xf32>
    %2 = tpu.matmul %0, %1, %cst {dimension_numbers = #tpu.dot_dimension_numbers<[1], [0], [0], [1], [0, 0, 1, 1], [], []>} : vector<112x128xbf16>, vector<128x256xbf16>, vector<112x256xf32> -> vector<112x256xf32>
    %c0_3 = arith.constant 0 : index
    %c0_4 = arith.constant 0 : index
    %3 = vector.load %arg4[%c0_3, %c0_4] : memref<1x256xf32, #tpu.memory_space<vmem>>, vector<1x256xf32>
    %4 = vector.broadcast %3 : vector<1x256xf32> to vector<112x256xf32>
    %5 = arith.addf %2, %4 : vector<112x256xf32>
    %6 = vector.extract_strided_slice %5 {offsets = [0, 0], sizes = [112, 128], strides = [1, 1]} : vector<112x256xf32> to vector<112x128xf32>
    %7 = vector.extract_strided_slice %5 {offsets = [0, 128], sizes = [112, 128], strides = [1, 1]} : vector<112x256xf32> to vector<112x128xf32>
    %cst_5 = arith.constant 5.000000e-01 : f32
    %8 = vector.broadcast %cst_5 : f32 to vector<112x128xf32>
    %9 = arith.mulf %8, %7 : vector<112x128xf32>
    %10 = math.exp %9 : vector<112x128xf32>
    %c0_6 = arith.constant 0 : index
    %c0_7 = arith.constant 0 : index
    %11 = vector.load %arg2[%c0_6, %c0_7] : memref<112x128xf32, #tpu.memory_space<vmem>>, vector<112x128xf32>
    %12 = arith.mulf %10, %11 : vector<112x128xf32>
    %13 = arith.addf %6, %12 : vector<112x128xf32>
    %c0_8 = arith.constant 0 : index
    %c0_9 = arith.constant 0 : index
    %14 = vector.load %arg8[%c0_8, %c0_9] : memref<112x128xf32, #tpu.memory_space<vmem>>, vector<112x128xf32>
    tpu.vector_store %arg8[%c0_8, %c0_9], %13 {strides = array<i32>} : memref<112x128xf32, #tpu.memory_space<vmem>>, vector<112x128xf32>,
    %15 = arith.mulf %10, %10 : vector<112x128xf32>
    %c0_10 = arith.constant 0 : index
    %c0_11 = arith.constant 0 : index
    %16 = vector.load %arg5[%c0_10, %c0_11] : memref<128x128xbf16, #tpu.memory_space<vmem>>, vector<128x128xbf16>
    %c0_12 = arith.constant 0 : index
    %c0_13 = arith.constant 0 : index
    %17 = vector.load %arg6[%c0_12, %c0_13] : memref<128x128xbf16, #tpu.memory_space<vmem>>, vector<128x128xbf16>
    %c0_14 = arith.constant 0 : index
    %c0_15 = arith.constant 0 : index
    %18 = vector.load %arg7[%c0_14, %c0_15] : memref<2x128xf32, #tpu.memory_space<vmem>>, vector<1x128xf32>
    %c1 = arith.constant 1 : index
    %c0_16 = arith.constant 0 : index
    %19 = vector.load %arg7[%c1, %c0_16] : memref<2x128xf32, #tpu.memory_space<vmem>>, vector<1x128xf32>
    %20 = arith.mulf %13, %13 : vector<112x128xf32>
    %21 = arith.truncf %20 : vector<112x128xf32> to vector<112x128xbf16>
    %22 = arith.mulf %6, %6 : vector<112x128xf32>
    %23 = arith.truncf %22 : vector<112x128xf32> to vector<112x128xbf16>
    %24 = arith.truncf %15 : vector<112x128xf32> to vector<112x128xbf16>
    %25 = arith.truncf %13 : vector<112x128xf32> to vector<112x128xbf16>
    %26 = arith.truncf %6 : vector<112x128xf32> to vector<112x128xbf16>
    %27 = tpu.concatenate %21, %24, %23 in 0 : vector<112x128xbf16>, vector<112x128xbf16>, vector<112x128xbf16> -> vector<336x128xbf16>
    %cst_17 = arith.constant dense<0.000000e+00> : vector<336x128xf32>
    %28 = tpu.matmul %27, %16, %cst_17 {dimension_numbers = #tpu.dot_dimension_numbers<[1], [0], [0], [1], [0, 0, 1, 1], [], []>} : vector<336x128xbf16>, vector<128x128xbf16>, vector<336x128xf32> -> vector<336x128xf32>
    %29 = vector.extract_strided_slice %28 {offsets = [0, 0], sizes = [112, 128], strides = [1, 1]} : vector<336x128xf32> to vector<112x128xf32>
    %30 = vector.extract_strided_slice %28 {offsets = [112, 0], sizes = [112, 128], strides = [1, 1]} : vector<336x128xf32> to vector<112x128xf32>
    %31 = vector.extract_strided_slice %28 {offsets = [224, 0], sizes = [112, 128], strides = [1, 1]} : vector<336x128xf32> to vector<112x128xf32>
    %32 = tpu.concatenate %25, %26 in 0 : vector<112x128xbf16>, vector<112x128xbf16> -> vector<224x128xbf16>
    %cst_18 = arith.constant dense<0.000000e+00> : vector<224x128xf32>
    %33 = tpu.matmul %32, %17, %cst_18 {dimension_numbers = #tpu.dot_dimension_numbers<[1], [0], [0], [1], [0, 0, 1, 1], [], []>} : vector<224x128xbf16>, vector<128x128xbf16>, vector<224x128xf32> -> vector<224x128xf32>
    %34 = vector.extract_strided_slice %33 {offsets = [0, 0], sizes = [112, 128], strides = [1, 1]} : vector<224x128xf32> to vector<112x128xf32>
    %35 = vector.extract_strided_slice %33 {offsets = [112, 0], sizes = [112, 128], strides = [1, 1]} : vector<224x128xf32> to vector<112x128xf32>
    %cst_19 = arith.constant 2.000000e+00 : f32
    %36 = vector.broadcast %cst_19 : f32 to vector<112x128xf32>
    %37 = arith.mulf %36, %34 : vector<112x128xf32>
    %38 = arith.subf %29, %37 : vector<112x128xf32>
    %39 = vector.broadcast %18 : vector<1x128xf32> to vector<112x128xf32>
    %40 = arith.addf %38, %39 : vector<112x128xf32>
    %cst_20 = arith.constant 0.000000e+00 : f32
    %41 = vector.broadcast %cst_20 : f32 to vector<112x128xf32>
    %42 = arith.subf %41, %40 : vector<112x128xf32>
    %43 = tpu.iota {dimensions = array<i32: 1>} : vector<1x128xi32>
    %c10_i32 = arith.constant 10 : i32
    %44 = vector.broadcast %c10_i32 : i32 to vector<1x128xi32>
    %45 = arith.cmpi slt, %43, %44 : vector<1x128xi32>
    %cst_21 = arith.constant -1.000000e+30 : f32
    %46 = vector.shape_cast %45 : vector<1x128xi1> to vector<1x128xi1>
    %47 = vector.broadcast %46 : vector<1x128xi1> to vector<112x128xi1>
    %48 = vector.broadcast %cst_21 : f32 to vector<112x128xf32>
    %49 = arith.select %47, %42, %48 : vector<112x128xi1>, vector<112x128xf32>
    %cst_22 = arith.constant dense<0xFF800000> : vector<112xf32>
    %50 = vector.multi_reduction <maximumf>, %49, %cst_22 [1] : vector<112x128xf32> to vector<112xf32>
    %51 = vector.shape_cast %50 : vector<112xf32> to vector<112x1xf32>
    %52 = vector.broadcast %51 : vector<112x1xf32> to vector<112x128xf32>
    %53 = arith.subf %49, %52 : vector<112x128xf32>
    %54 = math.exp %53 : vector<112x128xf32>
    %cst_23 = arith.constant dense<0.000000e+00> : vector<112xf32>
    %55 = vector.multi_reduction <add>, %54, %cst_23 [1] : vector<112x128xf32> to vector<112xf32>
    %56 = vector.shape_cast %55 : vector<112xf32> to vector<112x1xf32>
    %57 = tpu.reciprocal %56 {approx = true} : vector<112x1xf32> -> vector<112x1xf32>
    %58 = vector.broadcast %57 : vector<112x1xf32> to vector<112x128xf32>
    %59 = arith.mulf %54, %58 : vector<112x128xf32>
    %cst_24 = arith.constant 1.000000e-10 : f32
    %60 = vector.broadcast %cst_24 : f32 to vector<112x128xf32>
    %61 = arith.addf %59, %60 : vector<112x128xf32>
    %cst_25 = arith.constant 0.000000e+00 : f32
    %62 = vector.shape_cast %45 : vector<1x128xi1> to vector<1x128xi1>
    %63 = vector.broadcast %62 : vector<1x128xi1> to vector<112x128xi1>
    %64 = vector.broadcast %cst_25 : f32 to vector<112x128xf32>
    %65 = arith.select %63, %61, %64 : vector<112x128xi1>, vector<112x128xf32>
    %66 = vector.broadcast %19 : vector<1x128xf32> to vector<112x128xf32>
    %67 = arith.addf %66, %30 : vector<112x128xf32>
    %68 = arith.addf %67, %31 : vector<112x128xf32>
    %cst_26 = arith.constant 2.000000e+00 : f32
    %69 = vector.broadcast %cst_26 : f32 to vector<112x128xf32>
    %70 = arith.mulf %69, %35 : vector<112x128xf32>
    %71 = arith.subf %68, %70 : vector<112x128xf32>
    %72 = vector.broadcast %18 : vector<1x128xf32> to vector<112x128xf32>
    %73 = arith.addf %71, %72 : vector<112x128xf32>
    %cst_27 = arith.constant 7.812500e-03 : f32
    %74 = vector.broadcast %cst_27 : f32 to vector<112x128xf32>
    %75 = arith.mulf %73, %74 : vector<112x128xf32>
    %76 = arith.mulf %65, %75 : vector<112x128xf32>
    %cst_28 = arith.constant dense<0.000000e+00> : vector<112xf32>
    %77 = vector.multi_reduction <add>, %76, %cst_28 [1] : vector<112x128xf32> to vector<112xf32>
    %cst_29 = arith.constant 5.000000e-01 : f32
    %78 = vector.broadcast %cst_29 : f32 to vector<112xf32>
    %79 = arith.mulf %78, %77 : vector<112xf32>
    %cst_30 = arith.constant dense<0.000000e+00> : vector<112xf32>
    %80 = vector.multi_reduction <add>, %7, %cst_30 [1] : vector<112x128xf32> to vector<112xf32>
    %cst_31 = arith.constant 7.812500e-03 : f32
    %81 = vector.broadcast %cst_31 : f32 to vector<112xf32>
    %82 = arith.mulf %80, %81 : vector<112xf32>
    %cst_32 = arith.constant 1.000000e+00 : f32
    %83 = vector.broadcast %cst_32 : f32 to vector<112xf32>
    %84 = arith.addf %83, %82 : vector<112xf32>
    %cst_33 = arith.constant 5.000000e-01 : f32
    %85 = vector.broadcast %cst_33 : f32 to vector<112xf32>
    %86 = arith.mulf %85, %84 : vector<112xf32>
    %87 = arith.subf %79, %86 : vector<112xf32>
    %88 = vector.shape_cast %87 : vector<112xf32> to vector<1x1x112xf32>
    %c0_34 = arith.constant 0 : index
    %c0_35 = arith.constant 0 : index
    %c0_36 = arith.constant 0 : index
    %89 = vector.load %arg9[%c0_34, %c0_35, %c0_36] : memref<1x1x112xf32, #tpu.memory_space<vmem>>, vector<1x1x112xf32>
    tpu.vector_store %arg9[%c0_34, %c0_35, %c0_36], %88 {strides = array<i32>} : memref<1x1x112xf32, #tpu.memory_space<vmem>>, vector<1x1x112xf32>,
    %c112_i32 = arith.constant 112 : i32
    %90 = arith.muli %arg0, %c112_i32 : i32
    %91 = tpu.iota {dimensions = array<i32: 0>} : vector<112x1xi32>
    %92 = vector.broadcast %90 : i32 to vector<112x1xi32>
    %93 = arith.addi %92, %91 : vector<112x1xi32>
    %c200_i32 = arith.constant 200 : i32
    %94 = vector.broadcast %c200_i32 : i32 to vector<112x1xi32>
    %95 = arith.cmpi slt, %93, %94 : vector<112x1xi32>
    %96 = arith.extui %95 : vector<112x1xi1> to vector<112x1xi32>
    %97 = arith.sitofp %96 : vector<112x1xi32> to vector<112x1xf32>
    %98 = vector.broadcast %97 : vector<112x1xf32> to vector<112x128xf32>
    %99 = arith.mulf %65, %98 : vector<112x128xf32>
    %cst_37 = arith.constant dense<0.000000e+00> : vector<128xf32>
    %100 = vector.multi_reduction <add>, %99, %cst_37 [0] : vector<112x128xf32> to vector<128xf32>
    %101 = vector.shape_cast %100 : vector<128xf32> to vector<1x128xf32>
    %102 = vector.shape_cast %101 : vector<1x128xf32> to vector<1x1x128xf32>
    %c0_38 = arith.constant 0 : index
    %c0_39 = arith.constant 0 : index
    %c0_40 = arith.constant 0 : index
    %103 = vector.load %arg10[%c0_38, %c0_39, %c0_40] : memref<1x1x128xf32, #tpu.memory_space<vmem>>, vector<1x1x128xf32>
    tpu.vector_store %arg10[%c0_38, %c0_39, %c0_40], %102 {strides = array<i32>} : memref<1x1x128xf32, #tpu.memory_space<vmem>>, vector<1x1x128xf32>,
    return
  }
  func.func @transform_0(%arg0: i32) -> (i32, i32) {
    %c0_i32 = arith.constant 0 : i32
    %c0_i32_0 = arith.constant 0 : i32
    return %arg0, %c0_i32 : i32, i32
  }
  func.func @transform_1(%arg0: i32) -> (i32, i32) {
    %c0_i32 = arith.constant 0 : i32
    %c0_i32_0 = arith.constant 0 : i32
    return %arg0, %c0_i32 : i32, i32
  }
  func.func @transform_2(%arg0: i32) -> (i32, i32) {
    %c0_i32 = arith.constant 0 : i32
    %c0_i32_0 = arith.constant 0 : i32
    %c0_i32_1 = arith.constant 0 : i32
    return %c0_i32, %c0_i32_0 : i32, i32
  }
  func.func @transform_3(%arg0: i32) -> (i32, i32) {
    %c0_i32 = arith.constant 0 : i32
    %c0_i32_0 = arith.constant 0 : i32
    %c0_i32_1 = arith.constant 0 : i32
    return %c0_i32, %c0_i32_0 : i32, i32
  }
  func.func @transform_4(%arg0: i32) -> (i32, i32) {
    %c0_i32 = arith.constant 0 : i32
    %c0_i32_0 = arith.constant 0 : i32
    %c0_i32_1 = arith.constant 0 : i32
    return %c0_i32, %c0_i32_0 : i32, i32
  }
  func.func @transform_5(%arg0: i32) -> (i32, i32) {
    %c0_i32 = arith.constant 0 : i32
    %c0_i32_0 = arith.constant 0 : i32
    %c0_i32_1 = arith.constant 0 : i32
    return %c0_i32, %c0_i32_0 : i32, i32
  }
  func.func @transform_6(%arg0: i32) -> (i32, i32) {
    %c0_i32 = arith.constant 0 : i32
    %c0_i32_0 = arith.constant 0 : i32
    %c0_i32_1 = arith.constant 0 : i32
    return %c0_i32, %c0_i32_0 : i32, i32
  }
  func.func @transform_7(%arg0: i32) -> (i32, i32) {
    %c0_i32 = arith.constant 0 : i32
    %c0_i32_0 = arith.constant 0 : i32
    return %arg0, %c0_i32 : i32, i32
  }
  func.func @transform_8(%arg0: i32) -> (i32, i32, i32) {
    %c0_i32 = arith.constant 0 : i32
    %c0_i32_0 = arith.constant 0 : i32
    %c0_i32_1 = arith.constant 0 : i32
    return %arg0, %c0_i32, %c0_i32_0 : i32, i32, i32
  }
  func.func @transform_9(%arg0: i32) -> (i32, i32, i32) {
    %c0_i32 = arith.constant 0 : i32
    %c0_i32_0 = arith.constant 0 : i32
    %c0_i32_1 = arith.constant 0 : i32
    return %arg0, %c0_i32, %c0_i32_0 : i32, i32, i32
  }
}

</mosaic_0001>

<llo_original>
// kernel: latent_gaussian_mixture.1
$region0: #{latent_gaussian_mixture.1}
  #allocation0 [shape = 'u32[]', space=smem, size = 0x4, offset = 0x4, fixed_abs, tag = 'smem constant byte address 0x4 - core index']
  #allocation1 [shape = 'u32[144,128]{1,0:T(1,128)}', space=vmem, size = 0x12000, scoped, tag = 'internal scratch']
  %s0 = inlined_call_operand.vmem [shape: bf16[224,128], index: 0, kind: input, shape index: {}]
  %s1 = inlined_call_operand.vmem [shape: f32[224,128], index: 1, kind: input, shape index: {}]
  %s2 = inlined_call_operand.vmem [shape: bf16[128,256], index: 2, kind: input, shape index: {}]
  %s3 = inlined_call_operand.vmem [shape: f32[1,256], index: 3, kind: input, shape index: {}]
  %s4 = inlined_call_operand.vmem [shape: bf16[128,128], index: 4, kind: input, shape index: {}]
  %s5 = inlined_call_operand.vmem [shape: bf16[128,128], index: 5, kind: input, shape index: {}]
  %s6 = inlined_call_operand.vmem [shape: f32[2,128], index: 6, kind: input, shape index: {}]
  %s7 = inlined_call_operand.vmem [shape: f32[224,128], index: 7, kind: output, shape index: {0}]
  %s8 = inlined_call_operand.vmem [shape: f32[2,1,112], index: 8, kind: output, shape index: {1}]
  %s9 = inlined_call_operand.vmem [shape: f32[2,1,128], index: 9, kind: output, shape index: {2}]
  %10 = xla_tuple %s7, %s8, %s9
  %s11 = sld [smem:[#allocation0]]
  $region77: #{latent_gaussian_mixture.1} parent=0
    _
  %s13 = ssub.s32 1, %s11
  %s14 = scalar_select 0, %s13, %s11
  loop: start=0, step=1, limit=4
  $region2: #{latent_gaussian_mixture.1} parent=0 // loop_pre_header
    _
  $region3: #{latent_gaussian_mixture.1} parent=0 // loop_header
    %s16 = sphi 0, %s20
    %p17 = scmp.ge.s32.totalorder %s16, 4
    %s26 = sphi 0, %s28
    %s29 = sphi 0, %s26
    %s30 = sphi 0, %s29
    %s46 = sphi 0, %s30
    %s52 = sphi 0, %s54
    %s55 = sphi 0, %s52
    %s56 = sphi 0, %s55
    %s72 = sphi 0, %s56
    %s76 = sphi 0, %s76
    %s78 = sphi 0, %s76
    %s79 = sphi 0, %s78
    %s93 = sphi 0, %s79
    %s97 = sphi 0, %s97
    %s99 = sphi 0, %s97
    %s100 = sphi 0, %s99
    %s114 = sphi 0, %s100
    %s118 = sphi 0, %s118
    %s120 = sphi 0, %s118
    %s121 = sphi 0, %s120
    %s135 = sphi 0, %s121
    %s139 = sphi 0, %s139
    %s141 = sphi 0, %s139
    %s142 = sphi 0, %s141
    %s156 = sphi 0, %s142
    %s160 = sphi 0, %s160
    %s162 = sphi 0, %s160
    %s163 = sphi 0, %s162
    %s177 = sphi 0, %s163
    %s183 = sphi 0, %s185
    %s186 = sphi 0, %s183
    %s187 = sphi 0, %s186
    %s203 = sphi 0, %s187
    %s209 = sphi 0, %s211
    %s212 = sphi 0, %s209
    %s213 = sphi 0, %s212
    %s229 = sphi 0, %s213
    %s235 = sphi 0, %s237
    %s238 = sphi 0, %s235
    %s239 = sphi 0, %s238
    %s255 = sphi 0, %s239
  $region4: #{latent_gaussian_mixture.1} parent=0 // loop_header_branch
    %19 = sbr.rel (%p17) target = $region8
  $region5: #{latent_gaussian_mixture.1} parent=0 // loop_body
    %s21 = ssub.s32 %s16, 1
    %s22 = ssub.s32 %s16, 2
    %s23 = sadd.s32 %s16, 1
    %s24 = ssub.s32 %s16, %s23
    %p25 = scmp.eq.s32.totalorder %s24, 0
    %s27 = sadd.s32 %s26, 1
    %s28 = scalar_select %p25, %s26, %s27
    %p31 = pneg %p25
    %p32 = scmp.eq.s32.totalorder %s16, 1
    %p33 = por %p31, %p32
    %p34 = scmp.ne.s32.totalorder %s26, %s29
    %p35 = scmp.eq.s32.totalorder %s16, 0
    %p36 = por %p34, %p35
    %p37 = scmp.ne.s32.totalorder %s26, %s29
    %p38 = scmp.eq.s32.totalorder %s21, 1
    %p39 = por %p37, %p38
    %p40 = scmp.ne.s32.totalorder %s29, %s30
    %p41 = scmp.eq.s32.totalorder %s21, 0
    %p42 = por %p40, %p41
    %p43 = scmp.ne.s32.totalorder %s29, %s30
    %p44 = scmp.eq.s32.totalorder %s22, 1
    %p45 = por %p43, %p44
    %p47 = scmp.ne.s32.totalorder %s30, %s46
    %p48 = scmp.eq.s32.totalorder %s22, 0
    %p49 = por %p47, %p48
    %s50 = ssub.s32 %s16, %s23
    %p51 = scmp.eq.s32.totalorder %s50, 0
    %s53 = sadd.s32 %s52, 1
    %s54 = scalar_select %p51, %s52, %s53
    %p57 = pneg %p51
    %p58 = scmp.eq.s32.totalorder %s16, 1
    %p59 = por %p57, %p58
    %p60 = scmp.ne.s32.totalorder %s52, %s55
    %p61 = scmp.eq.s32.totalorder %s16, 0
    %p62 = por %p60, %p61
    %p63 = scmp.ne.s32.totalorder %s52, %s55
    %p64 = scmp.eq.s32.totalorder %s21, 1
    %p65 = por %p63, %p64
    %p66 = scmp.ne.s32.totalorder %s55, %s56
    %p67 = scmp.eq.s32.totalorder %s21, 0
    %p68 = por %p66, %p67
    %p69 = scmp.ne.s32.totalorder %s55, %s56
    %p70 = scmp.eq.s32.totalorder %s22, 1
    %p71 = por %p69, %p70
    %p73 = scmp.ne.s32.totalorder %s56, %s72
    %p74 = scmp.eq.s32.totalorder %s22, 0
    %p75 = por %p73, %p74
    %s77 = sadd.s32 %s76, 1
    %p80 = scmp.eq.s32.totalorder %s16, 1
    %p81 = scmp.ne.s32.totalorder %s76, %s78
    %p82 = scmp.eq.s32.totalorder %s16, 0
    %p83 = por %p81, %p82
    %p84 = scmp.ne.s32.totalorder %s76, %s78
    %p85 = scmp.eq.s32.totalorder %s21, 1
    %p86 = por %p84, %p85
    %p87 = scmp.ne.s32.totalorder %s78, %s79
    %p88 = scmp.eq.s32.totalorder %s21, 0
    %p89 = por %p87, %p88
    %p90 = scmp.ne.s32.totalorder %s78, %s79
    %p91 = scmp.eq.s32.totalorder %s22, 1
    %p92 = por %p90, %p91
    %p94 = scmp.ne.s32.totalorder %s79, %s93
    %p95 = scmp.eq.s32.totalorder %s22, 0
    %p96 = por %p94, %p95
    %s98 = sadd.s32 %s97, 1
    %p101 = scmp.eq.s32.totalorder %s16, 1
    %p102 = scmp.ne.s32.totalorder %s97, %s99
    %p103 = scmp.eq.s32.totalorder %s16, 0
    %p104 = por %p102, %p103
    %p105 = scmp.ne.s32.totalorder %s97, %s99
    %p106 = scmp.eq.s32.totalorder %s21, 1
    %p107 = por %p105, %p106
    %p108 = scmp.ne.s32.totalorder %s99, %s100
    %p109 = scmp.eq.s32.totalorder %s21, 0
    %p110 = por %p108, %p109
    %p111 = scmp.ne.s32.totalorder %s99, %s100
    %p112 = scmp.eq.s32.totalorder %s22, 1
    %p113 = por %p111, %p112
    %p115 = scmp.ne.s32.totalorder %s100, %s114
    %p116 = scmp.eq.s32.totalorder %s22, 0
    %p117 = por %p115, %p116
    %s119 = sadd.s32 %s118, 1
    %p122 = scmp.eq.s32.totalorder %s16, 1
    %p123 = scmp.ne.s32.totalorder %s118, %s120
    %p124 = scmp.eq.s32.totalorder %s16, 0
    %p125 = por %p123, %p124
    %p126 = scmp.ne.s32.totalorder %s118, %s120
    %p127 = scmp.eq.s32.totalorder %s21, 1
    %p128 = por %p126, %p127
    %p129 = scmp.ne.s32.totalorder %s120, %s121
    %p130 = scmp.eq.s32.totalorder %s21, 0
    %p131 = por %p129, %p130
    %p132 = scmp.ne.s32.totalorder %s120, %s121
    %p133 = scmp.eq.s32.totalorder %s22, 1
    %p134 = por %p132, %p133
    %p136 = scmp.ne.s32.totalorder %s121, %s135
    %p137 = scmp.eq.s32.totalorder %s22, 0
    %p138 = por %p136, %p137
    %s140 = sadd.s32 %s139, 1
    %p143 = scmp.eq.s32.totalorder %s16, 1
    %p144 = scmp.ne.s32.totalorder %s139, %s141
    %p145 = scmp.eq.s32.totalorder %s16, 0
    %p146 = por %p144, %p145
    %p147 = scmp.ne.s32.totalorder %s139, %s141
    %p148 = scmp.eq.s32.totalorder %s21, 1
    %p149 = por %p147, %p148
    %p150 = scmp.ne.s32.totalorder %s141, %s142
    %p151 = scmp.eq.s32.totalorder %s21, 0
    %p152 = por %p150, %p151
    %p153 = scmp.ne.s32.totalorder %s141, %s142
    %p154 = scmp.eq.s32.totalorder %s22, 1
    %p155 = por %p153, %p154
    %p157 = scmp.ne.s32.totalorder %s142, %s156
    %p158 = scmp.eq.s32.totalorder %s22, 0
    %p159 = por %p157, %p158
    %s161 = sadd.s32 %s160, 1
    %p164 = scmp.eq.s32.totalorder %s16, 1
    %p165 = scmp.ne.s32.totalorder %s160, %s162
    %p166 = scmp.eq.s32.totalorder %s16, 0
    %p167 = por %p165, %p166
    %p168 = scmp.ne.s32.totalorder %s160, %s162
    %p169 = scmp.eq.s32.totalorder %s21, 1
    %p170 = por %p168, %p169
    %p171 = scmp.ne.s32.totalorder %s162, %s163
    %p172 = scmp.eq.s32.totalorder %s21, 0
    %p173 = por %p171, %p172
    %p174 = scmp.ne.s32.totalorder %s162, %s163
    %p175 = scmp.eq.s32.totalorder %s22, 1
    %p176 = por %p174, %p175
    %p178 = scmp.ne.s32.totalorder %s163, %s177
    %p179 = scmp.eq.s32.totalorder %s22, 0
    %p180 = por %p178, %p179
    %s181 = ssub.s32 %s16, %s23
    %p182 = scmp.eq.s32.totalorder %s181, 0
    %s184 = sadd.s32 %s183, 1
    %s185 = scalar_select %p182, %s183, %s184
    %p188 = pneg %p182
    %p189 = scmp.eq.s32.totalorder %s16, 1
    %p190 = por %p188, %p189
    %p191 = scmp.ne.s32.totalorder %s183, %s186
    %p192 = scmp.eq.s32.totalorder %s16, 0
    %p193 = por %p191, %p192
    %p194 = scmp.ne.s32.totalorder %s183, %s186
    %p195 = scmp.eq.s32.totalorder %s21, 1
    %p196 = por %p194, %p195
    %p197 = scmp.ne.s32.totalorder %s186, %s187
    %p198 = scmp.eq.s32.totalorder %s21, 0
    %p199 = por %p197, %p198
    %p200 = scmp.ne.s32.totalorder %s186, %s187
    %p201 = scmp.eq.s32.totalorder %s22, 1
    %p202 = por %p200, %p201
    %p204 = scmp.ne.s32.totalorder %s187, %s203
    %p205 = scmp.eq.s32.totalorder %s22, 0
    %p206 = por %p204, %p205
    %s207 = ssub.s32 %s16, %s23
    %p208 = scmp.eq.s32.totalorder %s207, 0
    %s210 = sadd.s32 %s209, 1
    %s211 = scalar_select %p208, %s209, %s210
    %p214 = pneg %p208
    %p215 = scmp.eq.s32.totalorder %s16, 1
    %p216 = por %p214, %p215
    %p217 = scmp.ne.s32.totalorder %s209, %s212
    %p218 = scmp.eq.s32.totalorder %s16, 0
    %p219 = por %p217, %p218
    %p220 = scmp.ne.s32.totalorder %s209, %s212
    %p221 = scmp.eq.s32.totalorder %s21, 1
    %p222 = por %p220, %p221
    %p223 = scmp.ne.s32.totalorder %s212, %s213
    %p224 = scmp.eq.s32.totalorder %s21, 0
    %p225 = por %p223, %p224
    %p226 = scmp.ne.s32.totalorder %s212, %s213
    %p227 = scmp.eq.s32.totalorder %s22, 1
    %p228 = por %p226, %p227
    %p230 = scmp.ne.s32.totalorder %s213, %s229
    %p231 = scmp.eq.s32.totalorder %s22, 0
    %p232 = por %p230, %p231
    %s233 = ssub.s32 %s16, %s23
    %p234 = scmp.eq.s32.totalorder %s233, 0
    %s236 = sadd.s32 %s235, 1
    %s237 = scalar_select %p234, %s235, %s236
    %p240 = pneg %p234
    %p241 = scmp.eq.s32.totalorder %s16, 1
    %p242 = por %p240, %p241
    %p243 = scmp.ne.s32.totalorder %s235, %s238
    %p244 = scmp.eq.s32.totalorder %s16, 0
    %p245 = por %p243, %p244
    %p246 = scmp.ne.s32.totalorder %s235, %s238
    %p247 = scmp.eq.s32.totalorder %s21, 1
    %p248 = por %p246, %p247
    %p249 = scmp.ne.s32.totalorder %s238, %s239
    %p250 = scmp.eq.s32.totalorder %s21, 0
    %p251 = por %p249, %p250
    %p252 = scmp.ne.s32.totalorder %s238, %s239
    %p253 = scmp.eq.s32.totalorder %s22, 1
    %p254 = por %p252, %p253
    %p256 = scmp.ne.s32.totalorder %s239, %s255
    %p257 = scmp.eq.s32.totalorder %s22, 0
    %p258 = por %p256, %p257
    %p259 = scmp.le.s32.totalorder 1, %s16
    %p260 = scmp.lt.s32.totalorder %s16, 3
    %p261 = pnand %p259, %p260
    %p262 = pneg %p261
    // Predicated region
    $region9: #{latent_gaussian_mixture.1} parent=5 // pred_check
      _
    $region10: #{latent_gaussian_mixture.1} parent=5 // pred_check_branch
      %264 = sbr.rel (%p261) target = $region12
    $region11: #{latent_gaussian_mixture.1} parent=5 // pred_region
      %s265 = ssub.s32 %s16, 1
      // Predicated region
      $region13: #{latent_gaussian_mixture.1} parent=11 // pred_check
        %p266 = pneg %p89
      $region14: #{latent_gaussian_mixture.1} parent=11 // pred_check_branch
        %268 = sbr.rel (%p266) target = $region16
      $region15: #{latent_gaussian_mixture.1} parent=11 // pred_region
        _
      $region16: #{latent_gaussian_mixture.1} parent=11 // pred_fallthru
        _
      // Predicated region
      $region17: #{latent_gaussian_mixture.1} parent=11 // pred_check
        %p269 = pneg %p110
      $region18: #{latent_gaussian_mixture.1} parent=11 // pred_check_branch
        %271 = sbr.rel (%p269) target = $region20
      $region19: #{latent_gaussian_mixture.1} parent=11 // pred_region
        _
      $region20: #{latent_gaussian_mixture.1} parent=11 // pred_fallthru
        _
      // Predicated region
      $region21: #{latent_gaussian_mixture.1} parent=11 // pred_check
        %p272 = pneg %p131
      $region22: #{latent_gaussian_mixture.1} parent=11 // pred_check_branch
        %274 = sbr.rel (%p272) target = $region24
      $region23: #{latent_gaussian_mixture.1} parent=11 // pred_region
        _
      $region24: #{latent_gaussian_mixture.1} parent=11 // pred_fallthru
        _
      // Predicated region
      $region25: #{latent_gaussian_mixture.1} parent=11 // pred_check
        %p275 = pneg %p152
      $region26: #{latent_gaussian_mixture.1} parent=11 // pred_check_branch
        %277 = sbr.rel (%p275) target = $region28
      $region27: #{latent_gaussian_mixture.1} parent=11 // pred_region
        _
      $region28: #{latent_gaussian_mixture.1} parent=11 // pred_fallthru
        _
      // Predicated region
      $region29: #{latent_gaussian_mixture.1} parent=11 // pred_check
        %p278 = pneg %p173
      $region30: #{latent_gaussian_mixture.1} parent=11 // pred_check_branch
        %280 = sbr.rel (%p278) target = $region32
      $region31: #{latent_gaussian_mixture.1} parent=11 // pred_region
        _
      $region32: #{latent_gaussian_mixture.1} parent=11 // pred_fallthru
        _
    $region12: #{latent_gaussian_mixture.1} parent=5 // pred_fallthru
      _
    %p281 = scmp.lt.s32.totalorder %s16, 2
    // Predicated region
    $region33: #{latent_gaussian_mixture.1} parent=5 // pred_check
      %p282 = pneg %p281
    $region34: #{latent_gaussian_mixture.1} parent=5 // pred_check_branch
      %284 = sbr.rel (%p282) target = $region36
    $region35: #{latent_gaussian_mixture.1} parent=5 // pred_region
      // Predicated region
      $region37: #{latent_gaussian_mixture.1} parent=35 // pred_check
        %p285 = pneg %p36
      $region38: #{latent_gaussian_mixture.1} parent=35 // pred_check_branch
        %287 = sbr.rel (%p285) target = $region40
      $region39: #{latent_gaussian_mixture.1} parent=35 // pred_region
        %s288 = smul.u32 14, %s16
        %p289 = scmp.lt.s32.totalorder %s288, 27
        %s290 = scalar_select %p289, %s288, 27
        %s291 = smul.addr %s290, 4
        %s292 = scalar_lea.vmem %s0, %s291
        %s293 = smul.u32 14, %s16
      $region40: #{latent_gaussian_mixture.1} parent=35 // pred_fallthru
        _
      // Predicated region
      $region41: #{latent_gaussian_mixture.1} parent=35 // pred_check
        %p294 = pneg %p62
      $region42: #{latent_gaussian_mixture.1} parent=35 // pred_check_branch
        %296 = sbr.rel (%p294) target = $region44
      $region43: #{latent_gaussian_mixture.1} parent=35 // pred_region
        %s297 = smul.u32 14, %s16
        %p298 = scmp.lt.s32.totalorder %s297, 27
        %s299 = scalar_select %p298, %s297, 27
        %s300 = smul.addr %s299, 8
        %s301 = scalar_lea.vmem %s1, %s300
        %s302 = smul.u32 14, %s16
      $region44: #{latent_gaussian_mixture.1} parent=35 // pred_fallthru
        _
    $region36: #{latent_gaussian_mixture.1} parent=5 // pred_fallthru
      _
    %p303 = scmp.le.s32.totalorder 1, %s16
    %p304 = scmp.lt.s32.totalorder %s16, 3
    %p305 = pnand %p303, %p304
    %p306 = pneg %p305
    // Predicated region
    $region45: #{latent_gaussian_mixture.1} parent=5 // pred_check
      _
    $region46: #{latent_gaussian_mixture.1} parent=5 // pred_check_branch
      %308 = sbr.rel (%p305) target = $region48
    $region47: #{latent_gaussian_mixture.1} parent=5 // pred_region
      %s309 = ssub.s32 %s16, 1
      %s310 = smul.u32 14, %s21
      %p311 = scmp.lt.s32.totalorder %s310, 27
      %s312 = scalar_select %p311, %s310, 27
      %s313 = smul.addr %s312, 4
      %s314 = scalar_lea.vmem %s0, %s313
      %p315 = pneg %p42
      %p316 = pneg %p39
      %s317 = smul.u32 14, %s21
      %p318 = scmp.lt.s32.totalorder %s317, 27
      %s319 = scalar_select %p318, %s317, 27
      %s320 = smul.addr %s319, 8
      %s321 = scalar_lea.vmem %s1, %s320
      %p322 = pneg %p68
      %p323 = pneg %p65
      %p324 = pneg %p89
      %p325 = pneg %p86
      %p326 = pneg %p110
      %p327 = pneg %p107
      %p328 = pneg %p131
      %p329 = pneg %p128
      %p330 = pneg %p152
      %p331 = pneg %p149
      %p332 = pneg %p173
      %p333 = pneg %p170
      %p334 = pneg %p199
      %p335 = pneg %p196
      %s336 = smul.u32 14, %s21
      %p337 = scmp.lt.s32.totalorder %s336, 27
      %s338 = scalar_select %p337, %s336, 27
      %s339 = smul.addr %s338, 8
      %s340 = scalar_lea.vmem %s7, %s339
      %p341 = pneg %p225
      %p342 = pneg %p222
      %p343 = scmp.lt.s32.totalorder %s21, 1
      %s344 = scalar_select %p343, %s21, 1
      %s345 = scalar_lea.vmem %s8, %s344
      %p346 = pneg %p251
      %p347 = pneg %p248
      %p348 = scmp.lt.s32.totalorder %s21, 1
      %s349 = scalar_select %p348, %s21, 1
      %s350 = scalar_lea.vmem %s9, %s349
      %s351 = smul.u32 14, %s21
      %p352 = scmp.lt.s32.totalorder %s351, 27
      %s353 = scalar_select %p352, %s351, 27
      %s354 = smul.addr %s353, 4
      %s355 = scalar_lea.vmem %s0, %s354
      %s356 = smul.u32 14, %s21
      %s357 = smul.u32 14, %s21
      %p358 = scmp.lt.s32.totalorder %s357, 27
      %s359 = scalar_select %p358, %s357, 27
      %s360 = smul.addr %s359, 8
      %s361 = scalar_lea.vmem %s1, %s360
      %s362 = smul.u32 14, %s21
      %s363 = smul.u32 14, %s21
      %p364 = scmp.lt.s32.totalorder %s363, 27
      %s365 = scalar_select %p364, %s363, 27
      %s366 = smul.addr %s365, 8
      %s367 = scalar_lea.vmem %s7, %s366
      %s368 = smul.u32 14, %s21
      %p369 = scmp.lt.s32.totalorder %s21, 1
      %s370 = scalar_select %p369, %s21, 1
      %s371 = scalar_lea.vmem %s8, %s370
      %p372 = scmp.lt.s32.totalorder %s21, 1
      %s373 = scalar_select %p372, %s21, 1
      %s374 = scalar_lea.vmem %s9, %s373
      %v376 = vld [vmem:[%s355] sm:$0xf]
      %v377 = vld [vmem:[%s355 + $0x4] sm:$0xf]
      %v378 = vld [vmem:[%s355 + $0x8] sm:$0xf]
      %v379 = vld [vmem:[%s355 + $0xc] sm:$0xf]
      %v380 = vld [vmem:[%s355 + $0x10] sm:$0xf]
      %v381 = vld [vmem:[%s355 + $0x14] sm:$0xf]
      %v382 = vld [vmem:[%s355 + $0x18] sm:$0xf]
      %v383 = vld [vmem:[%s355 + $0x1c] sm:$0xf]
      %v384 = vld [vmem:[%s355 + $0x20] sm:$0xf]
      %v385 = vld [vmem:[%s355 + $0x24] sm:$0xf]
      %v386 = vld [vmem:[%s355 + $0x28] sm:$0xf]
      %v387 = vld [vmem:[%s355 + $0x2c] sm:$0xf]
      %v388 = vld [vmem:[%s355 + $0x30] sm:$0xf]
      %v389 = vld [vmem:[%s355 + $0x34] sm:$0xf]
      %v390 = vld [vmem:[%s2] sm:$0xff]
      %v391 = vld [vmem:[%s2 + $0x8] sm:$0xff]
      %v392 = vld [vmem:[%s2 + $0x10] sm:$0xff]
      %v393 = vld [vmem:[%s2 + $0x18] sm:$0xff]
      %v394 = vld [vmem:[%s2 + $0x20] sm:$0xff]
      %v395 = vld [vmem:[%s2 + $0x28] sm:$0xff]
      %v396 = vld [vmem:[%s2 + $0x30] sm:$0xff]
      %v397 = vld [vmem:[%s2 + $0x38] sm:$0xff]
      %v398 = vld [vmem:[%s2 + $0x40] sm:$0xff]
      %v399 = vld [vmem:[%s2 + $0x48] sm:$0xff]
      %v400 = vld [vmem:[%s2 + $0x50] sm:$0xff]
      %v401 = vld [vmem:[%s2 + $0x58] sm:$0xff]
      %v402 = vld [vmem:[%s2 + $0x60] sm:$0xff]
      %v403 = vld [vmem:[%s2 + $0x68] sm:$0xff]
      %v404 = vld [vmem:[%s2 + $0x70] sm:$0xff]
      %v405 = vld [vmem:[%s2 + $0x78] sm:$0xff]
      %v406 = vld [vmem:[%s3] sm:$0x3]
      %v408 = vlaneseq
      %v409 = vshrl.u32 %v408, 7
      %v410 = vsub.s32 0, %v409
      %v411 = vrot.slane %v406, %v410
      %v412 = vlaneseq
      %v413 = vshrl.u32 %v412, 7
      %v414 = vsub.s32 1, %v413
      %v415 = vrot.slane %v406, %v414
      %v432 = vunpack.c.l.b16 %v376
      %v433 = vunpack.c.l.b16 %v377
      %v434 = vunpack.c.l.b16 %v378
      %v435 = vunpack.c.l.b16 %v379
      %v436 = vunpack.c.l.b16 %v380
      %v437 = vunpack.c.l.b16 %v381
      %v438 = vunpack.c.l.b16 %v382
      %v439 = vunpack.c.l.b16 %v383
      %v440 = vunpack.c.l.b16 %v384
      %v441 = vunpack.c.l.b16 %v385
      %v442 = vunpack.c.l.b16 %v386
      %v443 = vunpack.c.l.b16 %v387
      %v444 = vunpack.c.l.b16 %v388
      %v445 = vunpack.c.l.b16 %v389
      %v446 = vpack.c.b16 %v433, %v432
      %v447 = vpack.c.b16 %v435, %v434
      %v448 = vpack.c.b16 %v437, %v436
      %v449 = vpack.c.b16 %v439, %v438
      %v450 = vpack.c.b16 %v441, %v440
      %v451 = vpack.c.b16 %v443, %v442
      %v452 = vpack.c.b16 %v445, %v444
      %v476 = vunpack.c.l.b16 %v390
      %v477 = vunpack.c.h.b16 %v390
      %v478 = vunpack.c.l.b16 %v391
      %v479 = vunpack.c.h.b16 %v391
      %v480 = vunpack.c.l.b16 %v392
      %v481 = vunpack.c.h.b16 %v392
      %v482 = vunpack.c.l.b16 %v393
      %v483 = vunpack.c.h.b16 %v393
      %v484 = vunpack.c.l.b16 %v394
      %v485 = vunpack.c.h.b16 %v394
      %v486 = vunpack.c.l.b16 %v395
      %v487 = vunpack.c.h.b16 %v395
      %v488 = vunpack.c.l.b16 %v396
      %v489 = vunpack.c.h.b16 %v396
      %v490 = vunpack.c.l.b16 %v397
      %v491 = vunpack.c.h.b16 %v397
      %v492 = vunpack.c.l.b16 %v398
      %v493 = vunpack.c.h.b16 %v398
      %v494 = vunpack.c.l.b16 %v399
      %v495 = vunpack.c.h.b16 %v399
      %v496 = vunpack.c.l.b16 %v400
      %v497 = vunpack.c.h.b16 %v400
      %v498 = vunpack.c.l.b16 %v401
      %v499 = vunpack.c.h.b16 %v401
      %v500 = vunpack.c.l.b16 %v402
      %v501 = vunpack.c.h.b16 %v402
      %v502 = vunpack.c.l.b16 %v403
      %v503 = vunpack.c.h.b16 %v403
      %v504 = vunpack.c.l.b16 %v404
      %v505 = vunpack.c.h.b16 %v404
      %v506 = vunpack.c.l.b16 %v405
      %v507 = vunpack.c.h.b16 %v405
      %v508 = vpack.c.b16 %v478, %v476
      %v509 = vpack.c.b16 %v479, %v477
      %v510 = vpack.c.b16 %v482, %v480
      %v511 = vpack.c.b16 %v483, %v481
      %v512 = vpack.c.b16 %v486, %v484
      %v513 = vpack.c.b16 %v487, %v485
      %v514 = vpack.c.b16 %v490, %v488
      %v515 = vpack.c.b16 %v491, %v489
      %v516 = vpack.c.b16 %v494, %v492
      %v517 = vpack.c.b16 %v495, %v493
      %v518 = vpack.c.b16 %v498, %v496
      %v519 = vpack.c.b16 %v499, %v497
      %v520 = vpack.c.b16 %v502, %v500
      %v521 = vpack.c.b16 %v503, %v501
      %v522 = vpack.c.b16 %v506, %v504
      %v523 = vpack.c.b16 %v507, %v505
      %540 = vmatprep.subr.bf16.mxu0 %v523
      %541 = vmatpush1.bf16.msra.mxu0 %v522
      %542 = vmatprep.subr.bf16.mxu0 %v521
      %543 = vmatpush1.bf16.msra.mxu0 %v520
      %544 = vmatprep.subr.bf16.mxu0 %v519
      %545 = vmatpush1.bf16.msra.mxu0 %v518
      %546 = vmatprep.subr.bf16.mxu0 %v517
      %547 = vmatpush1.bf16.msra.mxu0 %v516
      %548 = vmatprep.subr.bf16.mxu0 %v515
      %549 = vmatpush1.bf16.msra.mxu0 %v514
      %550 = vmatprep.subr.bf16.mxu0 %v513
      %551 = vmatpush1.bf16.msra.mxu0 %v512
      %552 = vmatprep.subr.bf16.mxu0 %v511
      %553 = vmatpush1.bf16.msra.mxu0 %v510
      %554 = vmatprep.subr.bf16.mxu0 %v509
      %555 = vmatpush1.bf16.msra.mxu0 %v508
      %556 = vmatprep.subr.bf16.mxu0 0
      %557 = vmatpush2.bf16.msra.mxu0 0
      %558 = vmatprep.subr.bf16.mxu0 0
      %559 = vmatpush2.bf16.msra.mxu0 0
      %560 = vmatprep.subr.bf16.mxu0 0
      %561 = vmatpush2.bf16.msra.mxu0 0
      %562 = vmatprep.subr.bf16.mxu0 0
      %563 = vmatpush2.bf16.msra.mxu0 0
      %564 = vmatprep.subr.bf16.mxu0 0
      %565 = vmatpush2.bf16.msra.mxu0 0
      %566 = vmatprep.subr.bf16.mxu0 0
      %567 = vmatpush2.bf16.msra.mxu0 0
      %568 = vmatprep.subr.bf16.mxu0 0
      %569 = vmatpush2.bf16.msra.mxu0 0
      %570 = vmatprep.subr.bf16.mxu0 0
      %571 = vmatpush2.bf16.msra.mxu0 0
      %572 = vmatprep.mubr.bf16.mxu0 0
      %573 = vmatmul.mubr.bf16.gmra.mxu0 %v446
      %v574 = vpop.f32.mrf.mxu0
      %v575 = vadd.f32 %v411, %v574
      %v576 = vpop.f32.mrf.mxu0
      %v577 = vadd.f32 %v415, %v576
      %v578 = vpop.f32.mrf.mxu0
      %v579 = vadd.f32 %v411, %v578
      %v580 = vpop.f32.mrf.mxu0
      %v581 = vadd.f32 %v415, %v580
      %582 = vmatprep.mubr.bf16.mxu0 0
      %583 = vmatmul.mubr.bf16.gmra.mxu0 %v447
      %v584 = vpop.f32.mrf.mxu0
      %v585 = vadd.f32 %v411, %v584
      %v586 = vpop.f32.mrf.mxu0
      %v587 = vadd.f32 %v415, %v586
      %v588 = vpop.f32.mrf.mxu0
      %v589 = vadd.f32 %v411, %v588
      %v590 = vpop.f32.mrf.mxu0
      %v591 = vadd.f32 %v415, %v590
      %592 = vmatprep.mubr.bf16.mxu0 0
      %593 = vmatmul.mubr.bf16.gmra.mxu0 %v448
      %v594 = vpop.f32.mrf.mxu0
      %v595 = vadd.f32 %v411, %v594
      %v596 = vpop.f32.mrf.mxu0
      %v597 = vadd.f32 %v415, %v596
      %v598 = vpop.f32.mrf.mxu0
      %v599 = vadd.f32 %v411, %v598
      %v600 = vpop.f32.mrf.mxu0
      %v601 = vadd.f32 %v415, %v600
      %602 = vmatprep.mubr.bf16.mxu0 0
      %603 = vmatmul.mubr.bf16.gmra.mxu0 %v449
      %v604 = vpop.f32.mrf.mxu0
      %v605 = vadd.f32 %v411, %v604
      %v606 = vpop.f32.mrf.mxu0
      %v607 = vadd.f32 %v415, %v606
      %v608 = vpop.f32.mrf.mxu0
      %v609 = vadd.f32 %v411, %v608
      %v610 = vpop.f32.mrf.mxu0
      %v611 = vadd.f32 %v415, %v610
      %612 = vmatprep.mubr.bf16.mxu0 0
      %613 = vmatmul.mubr.bf16.gmra.mxu0 %v450
      %v614 = vpop.f32.mrf.mxu0
      %v615 = vadd.f32 %v411, %v614
      %v616 = vpop.f32.mrf.mxu0
      %v617 = vadd.f32 %v415, %v616
      %v618 = vpop.f32.mrf.mxu0
      %v619 = vadd.f32 %v411, %v618
      %v620 = vpop.f32.mrf.mxu0
      %v621 = vadd.f32 %v415, %v620
      %622 = vmatprep.mubr.bf16.mxu0 0
      %623 = vmatmul.mubr.bf16.gmra.mxu0 %v451
      %v624 = vpop.f32.mrf.mxu0
      %v625 = vadd.f32 %v411, %v624
      %v626 = vpop.f32.mrf.mxu0
      %v627 = vadd.f32 %v415, %v626
      %v628 = vpop.f32.mrf.mxu0
      %v629 = vadd.f32 %v411, %v628
      %v630 = vpop.f32.mrf.mxu0
      %v631 = vadd.f32 %v415, %v630
      %632 = vmatprep.mubr.bf16.mxu0 0
      %633 = vmatmul.mubr.bf16.gmra.mxu0 %v452
      %v634 = vpop.f32.mrf.mxu0
      %v635 = vadd.f32 %v411, %v634
      %v636 = vpop.f32.mrf.mxu0
      %v637 = vadd.f32 %v415, %v636
      %v638 = vpop.f32.mrf.mxu0
      %v639 = vadd.f32 %v411, %v638
      %v640 = vpop.f32.mrf.mxu0
      %v641 = vadd.f32 %v415, %v640
      %642 = vdwg.mxu0
      %v643 = vmul.f32 %v577, 0.5
      %v644 = vmul.f32 %v581, 0.5
      %v645 = vmul.f32 %v587, 0.5
      %v646 = vmul.f32 %v591, 0.5
      %v647 = vmul.f32 %v597, 0.5
      %v648 = vmul.f32 %v601, 0.5
      %v649 = vmul.f32 %v607, 0.5
      %v650 = vmul.f32 %v611, 0.5
      %v651 = vmul.f32 %v617, 0.5
      %v652 = vmul.f32 %v621, 0.5
      %v653 = vmul.f32 %v627, 0.5
      %v654 = vmul.f32 %v631, 0.5
      %v655 = vmul.f32 %v637, 0.5
      %v656 = vmul.f32 %v641, 0.5
      %v657 = vmul.f32 %v643, 1.442695
      %v658 = vpow.pop %v657
      %v659 = vmul.f32 %v644, 1.442695
      %v660 = vpow.pop %v659
      %v661 = vmul.f32 %v645, 1.442695
      %v662 = vpow.pop %v661
      %v663 = vmul.f32 %v646, 1.442695
      %v664 = vpow.pop %v663
      %v665 = vmul.f32 %v647, 1.442695
      %v666 = vpow.pop %v665
      %v667 = vmul.f32 %v648, 1.442695
      %v668 = vpow.pop %v667
      %v669 = vmul.f32 %v649, 1.442695
      %v670 = vpow.pop %v669
      %v671 = vmul.f32 %v650, 1.442695
      %v672 = vpow.pop %v671
      %v673 = vmul.f32 %v651, 1.442695
      %v674 = vpow.pop %v673
      %v675 = vmul.f32 %v652, 1.442695
      %v676 = vpow.pop %v675
      %v677 = vmul.f32 %v653, 1.442695
      %v678 = vpow.pop %v677
      %v679 = vmul.f32 %v654, 1.442695
      %v680 = vpow.pop %v679
      %v681 = vmul.f32 %v655, 1.442695
      %v682 = vpow.pop %v681
      %v683 = vmul.f32 %v656, 1.442695
      %v684 = vpow.pop %v683
      %v685 = vld [vmem:[%s361] sm:$0xff]
      %v686 = vld [vmem:[%s361 + $0x8] sm:$0xff]
      %v687 = vld [vmem:[%s361 + $0x10] sm:$0xff]
      %v688 = vld [vmem:[%s361 + $0x18] sm:$0xff]
      %v689 = vld [vmem:[%s361 + $0x20] sm:$0xff]
      %v690 = vld [vmem:[%s361 + $0x28] sm:$0xff]
      %v691 = vld [vmem:[%s361 + $0x30] sm:$0xff]
      %v692 = vld [vmem:[%s361 + $0x38] sm:$0xff]
      %v693 = vld [vmem:[%s361 + $0x40] sm:$0xff]
      %v694 = vld [vmem:[%s361 + $0x48] sm:$0xff]
      %v695 = vld [vmem:[%s361 + $0x50] sm:$0xff]
      %v696 = vld [vmem:[%s361 + $0x58] sm:$0xff]
      %v697 = vld [vmem:[%s361 + $0x60] sm:$0xff]
      %v698 = vld [vmem:[%s361 + $0x68] sm:$0xff]
      %v699 = vmul.f32 %v658, %v685
      %v700 = vmul.f32 %v660, %v686
      %v701 = vmul.f32 %v662, %v687
      %v702 = vmul.f32 %v664, %v688
      %v703 = vmul.f32 %v666, %v689
      %v704 = vmul.f32 %v668, %v690
      %v705 = vmul.f32 %v670, %v691
      %v706 = vmul.f32 %v672, %v692
      %v707 = vmul.f32 %v674, %v693
      %v708 = vmul.f32 %v676, %v694
      %v709 = vmul.f32 %v678, %v695
      %v710 = vmul.f32 %v680, %v696
      %v711 = vmul.f32 %v682, %v697
      %v712 = vmul.f32 %v684, %v698
      %v713 = vadd.f32 %v575, %v699
      %v714 = vadd.f32 %v579, %v700
      %v715 = vadd.f32 %v585, %v701
      %v716 = vadd.f32 %v589, %v702
      %v717 = vadd.f32 %v595, %v703
      %v718 = vadd.f32 %v599, %v704
      %v719 = vadd.f32 %v605, %v705
      %v720 = vadd.f32 %v609, %v706
      %v721 = vadd.f32 %v615, %v707
      %v722 = vadd.f32 %v619, %v708
      %v723 = vadd.f32 %v625, %v709
      %v724 = vadd.f32 %v629, %v710
      %v725 = vadd.f32 %v635, %v711
      %v726 = vadd.f32 %v639, %v712
      %727 = vst [vmem:[%s367] sm:$0xff] %v713
      %728 = vst [vmem:[%s367 + $0x8] sm:$0xff] %v714
      %729 = vst [vmem:[%s367 + $0x10] sm:$0xff] %v715
      %730 = vst [vmem:[%s367 + $0x18] sm:$0xff] %v716
      %731 = vst [vmem:[%s367 + $0x20] sm:$0xff] %v717
      %732 = vst [vmem:[%s367 + $0x28] sm:$0xff] %v718
      %733 = vst [vmem:[%s367 + $0x30] sm:$0xff] %v719
      %734 = vst [vmem:[%s367 + $0x38] sm:$0xff] %v720
      %735 = vst [vmem:[%s367 + $0x40] sm:$0xff] %v721
      %736 = vst [vmem:[%s367 + $0x48] sm:$0xff] %v722
      %737 = vst [vmem:[%s367 + $0x50] sm:$0xff] %v723
      %738 = vst [vmem:[%s367 + $0x58] sm:$0xff] %v724
      %739 = vst [vmem:[%s367 + $0x60] sm:$0xff] %v725
      %740 = vst [vmem:[%s367 + $0x68] sm:$0xff] %v726
      %v741 = vmul.f32 %v658, %v658
      %v742 = vmul.f32 %v660, %v660
      %v743 = vmul.f32 %v662, %v662
      %v744 = vmul.f32 %v664, %v664
      %v745 = vmul.f32 %v666, %v666
      %v746 = vmul.f32 %v668, %v668
      %v747 = vmul.f32 %v670, %v670
      %v748 = vmul.f32 %v672, %v672
      %v749 = vmul.f32 %v674, %v674
      %v750 = vmul.f32 %v676, %v676
      %v751 = vmul.f32 %v678, %v678
      %v752 = vmul.f32 %v680, %v680
      %v753 = vmul.f32 %v682, %v682
      %v754 = vmul.f32 %v684, %v684
      %v755 = vld [vmem:[%s4] sm:$0xf]
      %v756 = vld [vmem:[%s4 + $0x4] sm:$0xf]
      %v757 = vld [vmem:[%s4 + $0x8] sm:$0xf]
      %v758 = vld [vmem:[%s4 + $0xc] sm:$0xf]
      %v759 = vld [vmem:[%s4 + $0x10] sm:$0xf]
      %v760 = vld [vmem:[%s4 + $0x14] sm:$0xf]
      %v761 = vld [vmem:[%s4 + $0x18] sm:$0xf]
      %v762 = vld [vmem:[%s4 + $0x1c] sm:$0xf]
      %v763 = vld [vmem:[%s4 + $0x20] sm:$0xf]
      %v764 = vld [vmem:[%s4 + $0x24] sm:$0xf]
      %v765 = vld [vmem:[%s4 + $0x28] sm:$0xf]
      %v766 = vld [vmem:[%s4 + $0x2c] sm:$0xf]
      %v767 = vld [vmem:[%s4 + $0x30] sm:$0xf]
      %v768 = vld [vmem:[%s4 + $0x34] sm:$0xf]
      %v769 = vld [vmem:[%s4 + $0x38] sm:$0xf]
      %v770 = vld [vmem:[%s4 + $0x3c] sm:$0xf]
      %v771 = vld [vmem:[%s5] sm:$0xf]
      %v772 = vld [vmem:[%s5 + $0x4] sm:$0xf]
      %v773 = vld [vmem:[%s5 + $0x8] sm:$0xf]
      %v774 = vld [vmem:[%s5 + $0xc] sm:$0xf]
      %v775 = vld [vmem:[%s5 + $0x10] sm:$0xf]
      %v776 = vld [vmem:[%s5 + $0x14] sm:$0xf]
      %v777 = vld [vmem:[%s5 + $0x18] sm:$0xf]
      %v778 = vld [vmem:[%s5 + $0x1c] sm:$0xf]
      %v779 = vld [vmem:[%s5 + $0x20] sm:$0xf]
      %v780 = vld [vmem:[%s5 + $0x24] sm:$0xf]
      %v781 = vld [vmem:[%s5 + $0x28] sm:$0xf]
      %v782 = vld [vmem:[%s5 + $0x2c] sm:$0xf]
      %v783 = vld [vmem:[%s5 + $0x30] sm:$0xf]
      %v784 = vld [vmem:[%s5 + $0x34] sm:$0xf]
      %v785 = vld [vmem:[%s5 + $0x38] sm:$0xf]
      %v786 = vld [vmem:[%s5 + $0x3c] sm:$0xf]
      %v787 = vld [vmem:[%s6] sm:$0x1]
      %v788 = vld [vmem:[%s6 + $0x1] sm:$0x1]
      %v789 = vmul.f32 %v713, %v713
      %v790 = vmul.f32 %v714, %v714
      %v791 = vmul.f32 %v715, %v715
      %v792 = vmul.f32 %v716, %v716
      %v793 = vmul.f32 %v717, %v717
      %v794 = vmul.f32 %v718, %v718
      %v795 = vmul.f32 %v719, %v719
      %v796 = vmul.f32 %v720, %v720
      %v797 = vmul.f32 %v721, %v721
      %v798 = vmul.f32 %v722, %v722
      %v799 = vmul.f32 %v723, %v723
      %v800 = vmul.f32 %v724, %v724
      %v801 = vmul.f32 %v725, %v725
      %v802 = vmul.f32 %v726, %v726
      %v803 = vpack.c.bf16 %v790, %v789
      %v804 = vpack.c.bf16 %v792, %v791
      %v805 = vpack.c.bf16 %v794, %v793
      %v806 = vpack.c.bf16 %v796, %v795
      %v807 = vpack.c.bf16 %v798, %v797
      %v808 = vpack.c.bf16 %v800, %v799
      %v809 = vpack.c.bf16 %v802, %v801
      %v810 = vmul.f32 %v575, %v575
      %v811 = vmul.f32 %v579, %v579
      %v812 = vmul.f32 %v585, %v585
      %v813 = vmul.f32 %v589, %v589
      %v814 = vmul.f32 %v595, %v595
      %v815 = vmul.f32 %v599, %v599
      %v816 = vmul.f32 %v605, %v605
      %v817 = vmul.f32 %v609, %v609
      %v818 = vmul.f32 %v615, %v615
      %v819 = vmul.f32 %v619, %v619
      %v820 = vmul.f32 %v625, %v625
      %v821 = vmul.f32 %v629, %v629
      %v822 = vmul.f32 %v635, %v635
      %v823 = vmul.f32 %v639, %v639
      %v824 = vpack.c.bf16 %v811, %v810
      %v825 = vpack.c.bf16 %v813, %v812
      %v826 = vpack.c.bf16 %v815, %v814
      %v827 = vpack.c.bf16 %v817, %v816
      %v828 = vpack.c.bf16 %v819, %v818
      %v829 = vpack.c.bf16 %v821, %v820
      %v830 = vpack.c.bf16 %v823, %v822
      %v831 = vpack.c.bf16 %v742, %v741
      %v832 = vpack.c.bf16 %v744, %v743
      %v833 = vpack.c.bf16 %v746, %v745
      %v834 = vpack.c.bf16 %v748, %v747
      %v835 = vpack.c.bf16 %v750, %v749
      %v836 = vpack.c.bf16 %v752, %v751
      %v837 = vpack.c.bf16 %v754, %v753
      %v838 = vpack.c.bf16 %v714, %v713
      %v839 = vpack.c.bf16 %v716, %v715
      %v840 = vpack.c.bf16 %v718, %v717
      %v841 = vpack.c.bf16 %v720, %v719
      %v842 = vpack.c.bf16 %v722, %v721
      %v843 = vpack.c.bf16 %v724, %v723
      %v844 = vpack.c.bf16 %v726, %v725
      %v845 = vpack.c.bf16 %v579, %v575
      %v846 = vpack.c.bf16 %v589, %v585
      %v847 = vpack.c.bf16 %v599, %v595
      %v848 = vpack.c.bf16 %v609, %v605
      %v849 = vpack.c.bf16 %v619, %v615
      %v850 = vpack.c.bf16 %v629, %v625
      %v851 = vpack.c.bf16 %v639, %v635
      %v868 = vunpack.c.l.b16 %v755
      %v869 = vunpack.c.l.b16 %v756
      %v870 = vunpack.c.l.b16 %v757
      %v871 = vunpack.c.l.b16 %v758
      %v872 = vunpack.c.l.b16 %v759
      %v873 = vunpack.c.l.b16 %v760
      %v874 = vunpack.c.l.b16 %v761
      %v875 = vunpack.c.l.b16 %v762
      %v876 = vunpack.c.l.b16 %v763
      %v877 = vunpack.c.l.b16 %v764
      %v878 = vunpack.c.l.b16 %v765
      %v879 = vunpack.c.l.b16 %v766
      %v880 = vunpack.c.l.b16 %v767
      %v881 = vunpack.c.l.b16 %v768
      %v882 = vunpack.c.l.b16 %v769
      %v883 = vunpack.c.l.b16 %v770
      %v884 = vpack.c.b16 %v869, %v868
      %v885 = vpack.c.b16 %v871, %v870
      %v886 = vpack.c.b16 %v873, %v872
      %v887 = vpack.c.b16 %v875, %v874
      %v888 = vpack.c.b16 %v877, %v876
      %v889 = vpack.c.b16 %v879, %v878
      %v890 = vpack.c.b16 %v881, %v880
      %v891 = vpack.c.b16 %v883, %v882
      %900 = vmatprep.subr.bf16.mxu0 0
      %901 = vmatpush1.bf16.msra.mxu0 %v891
      %902 = vmatprep.subr.bf16.mxu0 0
      %903 = vmatpush1.bf16.msra.mxu0 %v890
      %904 = vmatprep.subr.bf16.mxu0 0
      %905 = vmatpush1.bf16.msra.mxu0 %v889
      %906 = vmatprep.subr.bf16.mxu0 0
      %907 = vmatpush1.bf16.msra.mxu0 %v888
      %908 = vmatprep.subr.bf16.mxu0 0
      %909 = vmatpush1.bf16.msra.mxu0 %v887
      %910 = vmatprep.subr.bf16.mxu0 0
      %911 = vmatpush1.bf16.msra.mxu0 %v886
      %912 = vmatprep.subr.bf16.mxu0 0
      %913 = vmatpush1.bf16.msra.mxu0 %v885
      %914 = vmatprep.subr.bf16.mxu0 0
      %915 = vmatpush1.bf16.msra.mxu0 %v884
      %916 = vmatprep.subr.bf16.mxu0 0
      %917 = vmatpush2.bf16.msra.mxu0 0
      %918 = vmatprep.subr.bf16.mxu0 0
      %919 = vmatpush2.bf16.msra.mxu0 0
      %920 = vmatprep.subr.bf16.mxu0 0
      %921 = vmatpush2.bf16.msra.mxu0 0
      %922 = vmatprep.subr.bf16.mxu0 0
      %923 = vmatpush2.bf16.msra.mxu0 0
      %924 = vmatprep.subr.bf16.mxu0 0
      %925 = vmatpush2.bf16.msra.mxu0 0
      %926 = vmatprep.subr.bf16.mxu0 0
      %927 = vmatpush2.bf16.msra.mxu0 0
      %928 = vmatprep.subr.bf16.mxu0 0
      %929 = vmatpush2.bf16.msra.mxu0 0
      %930 = vmatprep.subr.bf16.mxu0 0
      %931 = vmatpush2.bf16.msra.mxu0 0
      %932 = vmatprep.mubr.bf16.mxu0 0
      %933 = vmatmul.mubr.bf16.gmra.mxu0 %v803
      %v934 = vpop.f32.mrf.mxu0
      %v935 = vadd.f32 0.0, %v934
      %v936 = vpop.f32.mrf.mxu0
      %v937 = vpop.f32.mrf.mxu0
      %v938 = vadd.f32 0.0, %v937
      %v939 = vpop.f32.mrf.mxu0
      %940 = vmatprep.mubr.bf16.mxu0 0
      %941 = vmatmul.mubr.bf16.gmra.mxu0 %v804
      %v942 = vpop.f32.mrf.mxu0
      %v943 = vadd.f32 0.0, %v942
      %v944 = vpop.f32.mrf.mxu0
      %v945 = vpop.f32.mrf.mxu0
      %v946 = vadd.f32 0.0, %v945
      %v947 = vpop.f32.mrf.mxu0
      %948 = vmatprep.mubr.bf16.mxu0 0
      %949 = vmatmul.mubr.bf16.gmra.mxu0 %v805
      %v950 = vpop.f32.mrf.mxu0
      %v951 = vadd.f32 0.0, %v950
      %v952 = vpop.f32.mrf.mxu0
      %v953 = vpop.f32.mrf.mxu0
      %v954 = vadd.f32 0.0, %v953
      %v955 = vpop.f32.mrf.mxu0
      %956 = vmatprep.mubr.bf16.mxu0 0
      %957 = vmatmul.mubr.bf16.gmra.mxu0 %v806
      %v958 = vpop.f32.mrf.mxu0
      %v959 = vadd.f32 0.0, %v958
      %v960 = vpop.f32.mrf.mxu0
      %v961 = vpop.f32.mrf.mxu0
      %v962 = vadd.f32 0.0, %v961
      %v963 = vpop.f32.mrf.mxu0
      %964 = vmatprep.mubr.bf16.mxu0 0
      %965 = vmatmul.mubr.bf16.gmra.mxu0 %v807
      %v966 = vpop.f32.mrf.mxu0
      %v967 = vadd.f32 0.0, %v966
      %v968 = vpop.f32.mrf.mxu0
      %v969 = vpop.f32.mrf.mxu0
      %v970 = vadd.f32 0.0, %v969
      %v971 = vpop.f32.mrf.mxu0
      %972 = vmatprep.mubr.bf16.mxu0 0
      %973 = vmatmul.mubr.bf16.gmra.mxu0 %v808
      %v974 = vpop.f32.mrf.mxu0
      %v975 = vadd.f32 0.0, %v974
      %v976 = vpop.f32.mrf.mxu0
      %v977 = vpop.f32.mrf.mxu0
      %v978 = vadd.f32 0.0, %v977
      %v979 = vpop.f32.mrf.mxu0
      %980 = vmatprep.mubr.bf16.mxu0 0
      %981 = vmatmul.mubr.bf16.gmra.mxu0 %v809
      %v982 = vpop.f32.mrf.mxu0
      %v983 = vadd.f32 0.0, %v982
      %v984 = vpop.f32.mrf.mxu0
      %v985 = vpop.f32.mrf.mxu0
      %v986 = vadd.f32 0.0, %v985
      %v987 = vpop.f32.mrf.mxu0
      %988 = vmatprep.mubr.bf16.mxu0 0
      %989 = vmatmul.mubr.bf16.gmra.mxu0 %v831
      %v990 = vpop.f32.mrf.mxu0
      %v991 = vadd.f32 0.0, %v990
      %v992 = vpop.f32.mrf.mxu0
      %v993 = vpop.f32.mrf.mxu0
      %v994 = vadd.f32 0.0, %v993
      %v995 = vpop.f32.mrf.mxu0
      %996 = vmatprep.mubr.bf16.mxu0 0
      %997 = vmatmul.mubr.bf16.gmra.mxu0 %v832
      %v998 = vpop.f32.mrf.mxu0
      %v999 = vadd.f32 0.0, %v998
      %v1000 = vpop.f32.mrf.mxu0
      %v1001 = vpop.f32.mrf.mxu0
      %v1002 = vadd.f32 0.0, %v1001
      %v1003 = vpop.f32.mrf.mxu0
      %1004 = vmatprep.mubr.bf16.mxu0 0
      %1005 = vmatmul.mubr.bf16.gmra.mxu0 %v833
      %v1006 = vpop.f32.mrf.mxu0
      %v1007 = vadd.f32 0.0, %v1006
      %v1008 = vpop.f32.mrf.mxu0
      %v1009 = vpop.f32.mrf.mxu0
      %v1010 = vadd.f32 0.0, %v1009
      %v1011 = vpop.f32.mrf.mxu0
      %1012 = vmatprep.mubr.bf16.mxu0 0
      %1013 = vmatmul.mubr.bf16.gmra.mxu0 %v834
      %v1014 = vpop.f32.mrf.mxu0
      %v1015 = vadd.f32 0.0, %v1014
      %v1016 = vpop.f32.mrf.mxu0
      %v1017 = vpop.f32.mrf.mxu0
      %v1018 = vadd.f32 0.0, %v1017
      %v1019 = vpop.f32.mrf.mxu0
      %1020 = vmatprep.mubr.bf16.mxu0 0
      %1021 = vmatmul.mubr.bf16.gmra.mxu0 %v835
      %v1022 = vpop.f32.mrf.mxu0
      %v1023 = vadd.f32 0.0, %v1022
      %v1024 = vpop.f32.mrf.mxu0
      %v1025 = vpop.f32.mrf.mxu0
      %v1026 = vadd.f32 0.0, %v1025
      %v1027 = vpop.f32.mrf.mxu0
      %1028 = vmatprep.mubr.bf16.mxu0 0
      %1029 = vmatmul.mubr.bf16.gmra.mxu0 %v836
      %v1030 = vpop.f32.mrf.mxu0
      %v1031 = vadd.f32 0.0, %v1030
      %v1032 = vpop.f32.mrf.mxu0
      %v1033 = vpop.f32.mrf.mxu0
      %v1034 = vadd.f32 0.0, %v1033
      %v1035 = vpop.f32.mrf.mxu0
      %1036 = vmatprep.mubr.bf16.mxu0 0
      %1037 = vmatmul.mubr.bf16.gmra.mxu0 %v837
      %v1038 = vpop.f32.mrf.mxu0
      %v1039 = vadd.f32 0.0, %v1038
      %v1040 = vpop.f32.mrf.mxu0
      %v1041 = vpop.f32.mrf.mxu0
      %v1042 = vadd.f32 0.0, %v1041
      %v1043 = vpop.f32.mrf.mxu0
      %1044 = vmatprep.mubr.bf16.mxu0 0
      %1045 = vmatmul.mubr.bf16.gmra.mxu0 %v824
      %v1046 = vpop.f32.mrf.mxu0
      %v1047 = vadd.f32 0.0, %v1046
      %v1048 = vpop.f32.mrf.mxu0
      %v1049 = vpop.f32.mrf.mxu0
      %v1050 = vadd.f32 0.0, %v1049
      %v1051 = vpop.f32.mrf.mxu0
      %1052 = vmatprep.mubr.bf16.mxu0 0
      %1053 = vmatmul.mubr.bf16.gmra.mxu0 %v825
      %v1054 = vpop.f32.mrf.mxu0
      %v1055 = vadd.f32 0.0, %v1054
      %v1056 = vpop.f32.mrf.mxu0
      %v1057 = vpop.f32.mrf.mxu0
      %v1058 = vadd.f32 0.0, %v1057
      %v1059 = vpop.f32.mrf.mxu0
      %1060 = vmatprep.mubr.bf16.mxu0 0
      %1061 = vmatmul.mubr.bf16.gmra.mxu0 %v826
      %v1062 = vpop.f32.mrf.mxu0
      %v1063 = vadd.f32 0.0, %v1062
      %v1064 = vpop.f32.mrf.mxu0
      %v1065 = vpop.f32.mrf.mxu0
      %v1066 = vadd.f32 0.0, %v1065
      %v1067 = vpop.f32.mrf.mxu0
      %1068 = vmatprep.mubr.bf16.mxu0 0
      %1069 = vmatmul.mubr.bf16.gmra.mxu0 %v827
      %v1070 = vpop.f32.mrf.mxu0
      %v1071 = vadd.f32 0.0, %v1070
      %v1072 = vpop.f32.mrf.mxu0
      %v1073 = vpop.f32.mrf.mxu0
      %v1074 = vadd.f32 0.0, %v1073
      %v1075 = vpop.f32.mrf.mxu0
      %1076 = vmatprep.mubr.bf16.mxu0 0
      %1077 = vmatmul.mubr.bf16.gmra.mxu0 %v828
      %v1078 = vpop.f32.mrf.mxu0
      %v1079 = vadd.f32 0.0, %v1078
      %v1080 = vpop.f32.mrf.mxu0
      %v1081 = vpop.f32.mrf.mxu0
      %v1082 = vadd.f32 0.0, %v1081
      %v1083 = vpop.f32.mrf.mxu0
      %1084 = vmatprep.mubr.bf16.mxu0 0
      %1085 = vmatmul.mubr.bf16.gmra.mxu0 %v829
      %v1086 = vpop.f32.mrf.mxu0
      %v1087 = vadd.f32 0.0, %v1086
      %v1088 = vpop.f32.mrf.mxu0
      %v1089 = vpop.f32.mrf.mxu0
      %v1090 = vadd.f32 0.0, %v1089
      %v1091 = vpop.f32.mrf.mxu0
      %1092 = vmatprep.mubr.bf16.mxu0 0
      %1093 = vmatmul.mubr.bf16.gmra.mxu0 %v830
      %v1094 = vpop.f32.mrf.mxu0
      %v1095 = vadd.f32 0.0, %v1094
      %v1096 = vpop.f32.mrf.mxu0
      %v1097 = vpop.f32.mrf.mxu0
      %v1098 = vadd.f32 0.0, %v1097
      %v1099 = vpop.f32.mrf.mxu0
      %1100 = vdwg.mxu0
      %v1117 = vunpack.c.l.b16 %v771
      %v1118 = vunpack.c.l.b16 %v772
      %v1119 = vunpack.c.l.b16 %v773
      %v1120 = vunpack.c.l.b16 %v774
      %v1121 = vunpack.c.l.b16 %v775
      %v1122 = vunpack.c.l.b16 %v776
      %v1123 = vunpack.c.l.b16 %v777
      %v1124 = vunpack.c.l.b16 %v778
      %v1125 = vunpack.c.l.b16 %v779
      %v1126 = vunpack.c.l.b16 %v780
      %v1127 = vunpack.c.l.b16 %v781
      %v1128 = vunpack.c.l.b16 %v782
      %v1129 = vunpack.c.l.b16 %v783
      %v1130 = vunpack.c.l.b16 %v784
      %v1131 = vunpack.c.l.b16 %v785
      %v1132 = vunpack.c.l.b16 %v786
      %v1133 = vpack.c.b16 %v1118, %v1117
      %v1134 = vpack.c.b16 %v1120, %v1119
      %v1135 = vpack.c.b16 %v1122, %v1121
      %v1136 = vpack.c.b16 %v1124, %v1123
      %v1137 = vpack.c.b16 %v1126, %v1125
      %v1138 = vpack.c.b16 %v1128, %v1127
      %v1139 = vpack.c.b16 %v1130, %v1129
      %v1140 = vpack.c.b16 %v1132, %v1131
      %1149 = vmatprep.subr.bf16.mxu0 0
      %1150 = vmatpush1.bf16.msra.mxu0 %v1140
      %1151 = vmatprep.subr.bf16.mxu0 0
      %1152 = vmatpush1.bf16.msra.mxu0 %v1139
      %1153 = vmatprep.subr.bf16.mxu0 0
      %1154 = vmatpush1.bf16.msra.mxu0 %v1138
      %1155 = vmatprep.subr.bf16.mxu0 0
      %1156 = vmatpush1.bf16.msra.mxu0 %v1137
      %1157 = vmatprep.subr.bf16.mxu0 0
      %1158 = vmatpush1.bf16.msra.mxu0 %v1136
      %1159 = vmatprep.subr.bf16.mxu0 0
      %1160 = vmatpush1.bf16.msra.mxu0 %v1135
      %1161 = vmatprep.subr.bf16.mxu0 0
      %1162 = vmatpush1.bf16.msra.mxu0 %v1134
      %1163 = vmatprep.subr.bf16.mxu0 0
      %1164 = vmatpush1.bf16.msra.mxu0 %v1133
      %1165 = vmatprep.subr.bf16.mxu0 0
      %1166 = vmatpush2.bf16.msra.mxu0 0
      %1167 = vmatprep.subr.bf16.mxu0 0
      %1168 = vmatpush2.bf16.msra.mxu0 0
      %1169 = vmatprep.subr.bf16.mxu0 0
      %1170 = vmatpush2.bf16.msra.mxu0 0
      %1171 = vmatprep.subr.bf16.mxu0 0
      %1172 = vmatpush2.bf16.msra.mxu0 0
      %1173 = vmatprep.subr.bf16.mxu0 0
      %1174 = vmatpush2.bf16.msra.mxu0 0
      %1175 = vmatprep.subr.bf16.mxu0 0
      %1176 = vmatpush2.bf16.msra.mxu0 0
      %1177 = vmatprep.subr.bf16.mxu0 0
      %1178 = vmatpush2.bf16.msra.mxu0 0
      %1179 = vmatprep.subr.bf16.mxu0 0
      %1180 = vmatpush2.bf16.msra.mxu0 0
      %1181 = vmatprep.mubr.bf16.mxu0 0
      %1182 = vmatmul.mubr.bf16.gmra.mxu0 %v838
      %v1183 = vpop.f32.mrf.mxu0
      %v1184 = vadd.f32 0.0, %v1183
      %v1185 = vpop.f32.mrf.mxu0
      %v1186 = vpop.f32.mrf.mxu0
      %v1187 = vadd.f32 0.0, %v1186
      %v1188 = vpop.f32.mrf.mxu0
      %1189 = vmatprep.mubr.bf16.mxu0 0
      %1190 = vmatmul.mubr.bf16.gmra.mxu0 %v839
      %v1191 = vpop.f32.mrf.mxu0
      %v1192 = vadd.f32 0.0, %v1191
      %v1193 = vpop.f32.mrf.mxu0
      %v1194 = vpop.f32.mrf.mxu0
      %v1195 = vadd.f32 0.0, %v1194
      %v1196 = vpop.f32.mrf.mxu0
      %1197 = vmatprep.mubr.bf16.mxu0 0
      %1198 = vmatmul.mubr.bf16.gmra.mxu0 %v840
      %v1199 = vpop.f32.mrf.mxu0
      %v1200 = vadd.f32 0.0, %v1199
      %v1201 = vpop.f32.mrf.mxu0
      %v1202 = vpop.f32.mrf.mxu0
      %v1203 = vadd.f32 0.0, %v1202
      %v1204 = vpop.f32.mrf.mxu0
      %1205 = vmatprep.mubr.bf16.mxu0 0
      %1206 = vmatmul.mubr.bf16.gmra.mxu0 %v841
      %v1207 = vpop.f32.mrf.mxu0
      %v1208 = vadd.f32 0.0, %v1207
      %v1209 = vpop.f32.mrf.mxu0
      %v1210 = vpop.f32.mrf.mxu0
      %v1211 = vadd.f32 0.0, %v1210
      %v1212 = vpop.f32.mrf.mxu0
      %1213 = vmatprep.mubr.bf16.mxu0 0
      %1214 = vmatmul.mubr.bf16.gmra.mxu0 %v842
      %v1215 = vpop.f32.mrf.mxu0
      %v1216 = vadd.f32 0.0, %v1215
      %v1217 = vpop.f32.mrf.mxu0
      %v1218 = vpop.f32.mrf.mxu0
      %v1219 = vadd.f32 0.0, %v1218
      %v1220 = vpop.f32.mrf.mxu0
      %1221 = vmatprep.mubr.bf16.mxu0 0
      %1222 = vmatmul.mubr.bf16.gmra.mxu0 %v843
      %v1223 = vpop.f32.mrf.mxu0
      %v1224 = vadd.f32 0.0, %v1223
      %v1225 = vpop.f32.mrf.mxu0
      %v1226 = vpop.f32.mrf.mxu0
      %v1227 = vadd.f32 0.0, %v1226
      %v1228 = vpop.f32.mrf.mxu0
      %1229 = vmatprep.mubr.bf16.mxu0 0
      %1230 = vmatmul.mubr.bf16.gmra.mxu0 %v844
      %v1231 = vpop.f32.mrf.mxu0
      %v1232 = vadd.f32 0.0, %v1231
      %v1233 = vpop.f32.mrf.mxu0
      %v1234 = vpop.f32.mrf.mxu0
      %v1235 = vadd.f32 0.0, %v1234
      %v1236 = vpop.f32.mrf.mxu0
      %1237 = vmatprep.mubr.bf16.mxu0 0
      %1238 = vmatmul.mubr.bf16.gmra.mxu0 %v845
      %v1239 = vpop.f32.mrf.mxu0
      %v1240 = vadd.f32 0.0, %v1239
      %v1241 = vpop.f32.mrf.mxu0
      %v1242 = vpop.f32.mrf.mxu0
      %v1243 = vadd.f32 0.0, %v1242
      %v1244 = vpop.f32.mrf.mxu0
      %1245 = vmatprep.mubr.bf16.mxu0 0
      %1246 = vmatmul.mubr.bf16.gmra.mxu0 %v846
      %v1247 = vpop.f32.mrf.mxu0
      %v1248 = vadd.f32 0.0, %v1247
      %v1249 = vpop.f32.mrf.mxu0
      %v1250 = vpop.f32.mrf.mxu0
      %v1251 = vadd.f32 0.0, %v1250
      %v1252 = vpop.f32.mrf.mxu0
      %1253 = vmatprep.mubr.bf16.mxu0 0
      %1254 = vmatmul.mubr.bf16.gmra.mxu0 %v847
      %v1255 = vpop.f32.mrf.mxu0
      %v1256 = vadd.f32 0.0, %v1255
      %v1257 = vpop.f32.mrf.mxu0
      %v1258 = vpop.f32.mrf.mxu0
      %v1259 = vadd.f32 0.0, %v1258
      %v1260 = vpop.f32.mrf.mxu0
      %1261 = vmatprep.mubr.bf16.mxu0 0
      %1262 = vmatmul.mubr.bf16.gmra.mxu0 %v848
      %v1263 = vpop.f32.mrf.mxu0
      %v1264 = vadd.f32 0.0, %v1263
      %v1265 = vpop.f32.mrf.mxu0
      %v1266 = vpop.f32.mrf.mxu0
      %v1267 = vadd.f32 0.0, %v1266
      %v1268 = vpop.f32.mrf.mxu0
      %1269 = vmatprep.mubr.bf16.mxu0 0
      %1270 = vmatmul.mubr.bf16.gmra.mxu0 %v849
      %v1271 = vpop.f32.mrf.mxu0
      %v1272 = vadd.f32 0.0, %v1271
      %v1273 = vpop.f32.mrf.mxu0
      %v1274 = vpop.f32.mrf.mxu0
      %v1275 = vadd.f32 0.0, %v1274
      %v1276 = vpop.f32.mrf.mxu0
      %1277 = vmatprep.mubr.bf16.mxu0 0
      %1278 = vmatmul.mubr.bf16.gmra.mxu0 %v850
      %v1279 = vpop.f32.mrf.mxu0
      %v1280 = vadd.f32 0.0, %v1279
      %v1281 = vpop.f32.mrf.mxu0
      %v1282 = vpop.f32.mrf.mxu0
      %v1283 = vadd.f32 0.0, %v1282
      %v1284 = vpop.f32.mrf.mxu0
      %1285 = vmatprep.mubr.bf16.mxu0 0
      %1286 = vmatmul.mubr.bf16.gmra.mxu0 %v851
      %v1287 = vpop.f32.mrf.mxu0
      %v1288 = vadd.f32 0.0, %v1287
      %v1289 = vpop.f32.mrf.mxu0
      %v1290 = vpop.f32.mrf.mxu0
      %v1291 = vadd.f32 0.0, %v1290
      %v1292 = vpop.f32.mrf.mxu0
      %1293 = vdwg.mxu0
      %v1294 = vmul.f32 %v1184, 2.0
      %v1295 = vmul.f32 %v1187, 2.0
      %v1296 = vmul.f32 %v1192, 2.0
      %v1297 = vmul.f32 %v1195, 2.0
      %v1298 = vmul.f32 %v1200, 2.0
      %v1299 = vmul.f32 %v1203, 2.0
      %v1300 = vmul.f32 %v1208, 2.0
      %v1301 = vmul.f32 %v1211, 2.0
      %v1302 = vmul.f32 %v1216, 2.0
      %v1303 = vmul.f32 %v1219, 2.0
      %v1304 = vmul.f32 %v1224, 2.0
      %v1305 = vmul.f32 %v1227, 2.0
      %v1306 = vmul.f32 %v1232, 2.0
      %v1307 = vmul.f32 %v1235, 2.0
      %v1308 = vsub.f32 %v935, %v1294
      %v1309 = vsub.f32 %v938, %v1295
      %v1310 = vsub.f32 %v943, %v1296
      %v1311 = vsub.f32 %v946, %v1297
      %v1312 = vsub.f32 %v951, %v1298
      %v1313 = vsub.f32 %v954, %v1299
      %v1314 = vsub.f32 %v959, %v1300
      %v1315 = vsub.f32 %v962, %v1301
      %v1316 = vsub.f32 %v967, %v1302
      %v1317 = vsub.f32 %v970, %v1303
      %v1318 = vsub.f32 %v975, %v1304
      %v1319 = vsub.f32 %v978, %v1305
      %v1320 = vsub.f32 %v983, %v1306
      %v1321 = vsub.f32 %v986, %v1307
      %v1322 = vlaneseq
      %v1323 = vshrl.u32 %v1322, 7
      %v1324 = vsub.s32 0, %v1323
      %v1325 = vrot.slane %v787, %v1324
      %v1326 = vadd.f32 %v1308, %v1325
      %v1327 = vadd.f32 %v1309, %v1325
      %v1328 = vadd.f32 %v1310, %v1325
      %v1329 = vadd.f32 %v1311, %v1325
      %v1330 = vadd.f32 %v1312, %v1325
      %v1331 = vadd.f32 %v1313, %v1325
      %v1332 = vadd.f32 %v1314, %v1325
      %v1333 = vadd.f32 %v1315, %v1325
      %v1334 = vadd.f32 %v1316, %v1325
      %v1335 = vadd.f32 %v1317, %v1325
      %v1336 = vadd.f32 %v1318, %v1325
      %v1337 = vadd.f32 %v1319, %v1325
      %v1338 = vadd.f32 %v1320, %v1325
      %v1339 = vadd.f32 %v1321, %v1325
      %v1340 = vsub.f32 0.0, %v1326
      %v1341 = vsub.f32 0.0, %v1327
      %v1342 = vsub.f32 0.0, %v1328
      %v1343 = vsub.f32 0.0, %v1329
      %v1344 = vsub.f32 0.0, %v1330
      %v1345 = vsub.f32 0.0, %v1331
      %v1346 = vsub.f32 0.0, %v1332
      %v1347 = vsub.f32 0.0, %v1333
      %v1348 = vsub.f32 0.0, %v1334
      %v1349 = vsub.f32 0.0, %v1335
      %v1350 = vsub.f32 0.0, %v1336
      %v1351 = vsub.f32 0.0, %v1337
      %v1352 = vsub.f32 0.0, %v1338
      %v1353 = vsub.f32 0.0, %v1339
      %v1354 = vlaneseq
      %v1355 = vand.u32 %v1354, 127
      %vm1356 = vcmp.lt.s32.totalorder %v1355, 10
      %v1357 = vsel %vm1356, 1, 0
      %vm1358 = vcmp.eq.s32.totalorder %v1357, 1
      %v1359 = vsel %vm1358, %v1340, -1e+30
      %v1360 = vsel %vm1358, %v1341, -1e+30
      %v1361 = vsel %vm1358, %v1342, -1e+30
      %v1362 = vsel %vm1358, %v1343, -1e+30
      %v1363 = vsel %vm1358, %v1344, -1e+30
      %v1364 = vsel %vm1358, %v1345, -1e+30
      %v1365 = vsel %vm1358, %v1346, -1e+30
      %v1366 = vsel %vm1358, %v1347, -1e+30
      %v1367 = vsel %vm1358, %v1348, -1e+30
      %v1368 = vsel %vm1358, %v1349, -1e+30
      %v1369 = vsel %vm1358, %v1350, -1e+30
      %v1370 = vsel %vm1358, %v1351, -1e+30
      %v1371 = vsel %vm1358, %v1352, -1e+30
      %v1372 = vsel %vm1358, %v1353, -1e+30
      %1373 = vmax.xlane.f32.xlu0 %v1359
      %v1374 = vpop.xlane.xlu0 %1373
      %1375 = vmax.xlane.f32.xlu0 %v1360
      %v1376 = vpop.xlane.xlu0 %1375
      %1377 = vmax.xlane.f32.xlu0 %v1361
      %v1378 = vpop.xlane.xlu0 %1377
      %1379 = vmax.xlane.f32.xlu0 %v1362
      %v1380 = vpop.xlane.xlu0 %1379
      %1381 = vmax.xlane.f32.xlu0 %v1363
      %v1382 = vpop.xlane.xlu0 %1381
      %1383 = vmax.xlane.f32.xlu0 %v1364
      %v1384 = vpop.xlane.xlu0 %1383
      %1385 = vmax.xlane.f32.xlu0 %v1365
      %v1386 = vpop.xlane.xlu0 %1385
      %1387 = vmax.xlane.f32.xlu0 %v1366
      %v1388 = vpop.xlane.xlu0 %1387
      %1389 = vmax.xlane.f32.xlu0 %v1367
      %v1390 = vpop.xlane.xlu0 %1389
      %1391 = vmax.xlane.f32.xlu0 %v1368
      %v1392 = vpop.xlane.xlu0 %1391
      %1393 = vmax.xlane.f32.xlu0 %v1369
      %v1394 = vpop.xlane.xlu0 %1393
      %1395 = vmax.xlane.f32.xlu0 %v1370
      %v1396 = vpop.xlane.xlu0 %1395
      %1397 = vmax.xlane.f32.xlu0 %v1371
      %v1398 = vpop.xlane.xlu0 %1397
      %1399 = vmax.xlane.f32.xlu0 %v1372
      %v1400 = vpop.xlane.xlu0 %1399
      %v1401 = vsub.f32 %v1359, %v1374
      %v1402 = vsub.f32 %v1360, %v1376
      %v1403 = vsub.f32 %v1361, %v1378
      %v1404 = vsub.f32 %v1362, %v1380
      %v1405 = vsub.f32 %v1363, %v1382
      %v1406 = vsub.f32 %v1364, %v1384
      %v1407 = vsub.f32 %v1365, %v1386
      %v1408 = vsub.f32 %v1366, %v1388
      %v1409 = vsub.f32 %v1367, %v1390
      %v1410 = vsub.f32 %v1368, %v1392
      %v1411 = vsub.f32 %v1369, %v1394
      %v1412 = vsub.f32 %v1370, %v1396
      %v1413 = vsub.f32 %v1371, %v1398
      %v1414 = vsub.f32 %v1372, %v1400
      %v1415 = vmul.f32 %v1401, 1.442695
      %v1416 = vpow.pop %v1415
      %v1417 = vmul.f32 %v1402, 1.442695
      %v1418 = vpow.pop %v1417
      %v1419 = vmul.f32 %v1403, 1.442695
      %v1420 = vpow.pop %v1419
      %v1421 = vmul.f32 %v1404, 1.442695
      %v1422 = vpow.pop %v1421
      %v1423 = vmul.f32 %v1405, 1.442695
      %v1424 = vpow.pop %v1423
      %v1425 = vmul.f32 %v1406, 1.442695
      %v1426 = vpow.pop %v1425
      %v1427 = vmul.f32 %v1407, 1.442695
      %v1428 = vpow.pop %v1427
      %v1429 = vmul.f32 %v1408, 1.442695
      %v1430 = vpow.pop %v1429
      %v1431 = vmul.f32 %v1409, 1.442695
      %v1432 = vpow.pop %v1431
      %v1433 = vmul.f32 %v1410, 1.442695
      %v1434 = vpow.pop %v1433
      %v1435 = vmul.f32 %v1411, 1.442695
      %v1436 = vpow.pop %v1435
      %v1437 = vmul.f32 %v1412, 1.442695
      %v1438 = vpow.pop %v1437
      %v1439 = vmul.f32 %v1413, 1.442695
      %v1440 = vpow.pop %v1439
      %v1441 = vmul.f32 %v1414, 1.442695
      %v1442 = vpow.pop %v1441
      %1443 = vadd.xlane.f32.xlu0 %v1416
      %v1444 = vpop.xlane.xlu0 %1443
      %1445 = vadd.xlane.f32.xlu0 %v1418
      %v1446 = vpop.xlane.xlu0 %1445
      %1447 = vadd.xlane.f32.xlu0 %v1420
      %v1448 = vpop.xlane.xlu0 %1447
      %1449 = vadd.xlane.f32.xlu0 %v1422
      %v1450 = vpop.xlane.xlu0 %1449
      %1451 = vadd.xlane.f32.xlu0 %v1424
      %v1452 = vpop.xlane.xlu0 %1451
      %1453 = vadd.xlane.f32.xlu0 %v1426
      %v1454 = vpop.xlane.xlu0 %1453
      %1455 = vadd.xlane.f32.xlu0 %v1428
      %v1456 = vpop.xlane.xlu0 %1455
      %1457 = vadd.xlane.f32.xlu0 %v1430
      %v1458 = vpop.xlane.xlu0 %1457
      %1459 = vadd.xlane.f32.xlu0 %v1432
      %v1460 = vpop.xlane.xlu0 %1459
      %1461 = vadd.xlane.f32.xlu0 %v1434
      %v1462 = vpop.xlane.xlu0 %1461
      %1463 = vadd.xlane.f32.xlu0 %v1436
      %v1464 = vpop.xlane.xlu0 %1463
      %1465 = vadd.xlane.f32.xlu0 %v1438
      %v1466 = vpop.xlane.xlu0 %1465
      %1467 = vadd.xlane.f32.xlu0 %v1440
      %v1468 = vpop.xlane.xlu0 %1467
      %1469 = vadd.xlane.f32.xlu0 %v1442
      %v1470 = vpop.xlane.xlu0 %1469
      %v1471 = vrcp.pop %v1444
      %v1472 = vrcp.pop %v1446
      %v1473 = vrcp.pop %v1448
      %v1474 = vrcp.pop %v1450
      %v1475 = vrcp.pop %v1452
      %v1476 = vrcp.pop %v1454
      %v1477 = vrcp.pop %v1456
      %v1478 = vrcp.pop %v1458
      %v1479 = vrcp.pop %v1460
      %v1480 = vrcp.pop %v1462
      %v1481 = vrcp.pop %v1464
      %v1482 = vrcp.pop %v1466
      %v1483 = vrcp.pop %v1468
      %v1484 = vrcp.pop %v1470
      %v1485 = vmul.f32 %v1416, %v1471
      %v1486 = vmul.f32 %v1418, %v1472
      %v1487 = vmul.f32 %v1420, %v1473
      %v1488 = vmul.f32 %v1422, %v1474
      %v1489 = vmul.f32 %v1424, %v1475
      %v1490 = vmul.f32 %v1426, %v1476
      %v1491 = vmul.f32 %v1428, %v1477
      %v1492 = vmul.f32 %v1430, %v1478
      %v1493 = vmul.f32 %v1432, %v1479
      %v1494 = vmul.f32 %v1434, %v1480
      %v1495 = vmul.f32 %v1436, %v1481
      %v1496 = vmul.f32 %v1438, %v1482
      %v1497 = vmul.f32 %v1440, %v1483
      %v1498 = vmul.f32 %v1442, %v1484
      %v1499 = vadd.f32 %v1485, 1e-10
      %v1500 = vadd.f32 %v1486, 1e-10
      %v1501 = vadd.f32 %v1487, 1e-10
      %v1502 = vadd.f32 %v1488, 1e-10
      %v1503 = vadd.f32 %v1489, 1e-10
      %v1504 = vadd.f32 %v1490, 1e-10
      %v1505 = vadd.f32 %v1491, 1e-10
      %v1506 = vadd.f32 %v1492, 1e-10
      %v1507 = vadd.f32 %v1493, 1e-10
      %v1508 = vadd.f32 %v1494, 1e-10
      %v1509 = vadd.f32 %v1495, 1e-10
      %v1510 = vadd.f32 %v1496, 1e-10
      %v1511 = vadd.f32 %v1497, 1e-10
      %v1512 = vadd.f32 %v1498, 1e-10
      %v1513 = vsel %vm1358, %v1499, 0.0
      %v1514 = vsel %vm1358, %v1500, 0.0
      %v1515 = vsel %vm1358, %v1501, 0.0
      %v1516 = vsel %vm1358, %v1502, 0.0
      %v1517 = vsel %vm1358, %v1503, 0.0
      %v1518 = vsel %vm1358, %v1504, 0.0
      %v1519 = vsel %vm1358, %v1505, 0.0
      %v1520 = vsel %vm1358, %v1506, 0.0
      %v1521 = vsel %vm1358, %v1507, 0.0
      %v1522 = vsel %vm1358, %v1508, 0.0
      %v1523 = vsel %vm1358, %v1509, 0.0
      %v1524 = vsel %vm1358, %v1510, 0.0
      %v1525 = vsel %vm1358, %v1511, 0.0
      %v1526 = vsel %vm1358, %v1512, 0.0
      %v1527 = vlaneseq
      %v1528 = vshrl.u32 %v1527, 7
      %v1529 = vsub.s32 0, %v1528
      %v1530 = vrot.slane %v788, %v1529
      %v1531 = vadd.f32 %v1530, %v991
      %v1532 = vadd.f32 %v1530, %v994
      %v1533 = vadd.f32 %v1530, %v999
      %v1534 = vadd.f32 %v1530, %v1002
      %v1535 = vadd.f32 %v1530, %v1007
      %v1536 = vadd.f32 %v1530, %v1010
      %v1537 = vadd.f32 %v1530, %v1015
      %v1538 = vadd.f32 %v1530, %v1018
      %v1539 = vadd.f32 %v1530, %v1023
      %v1540 = vadd.f32 %v1530, %v1026
      %v1541 = vadd.f32 %v1530, %v1031
      %v1542 = vadd.f32 %v1530, %v1034
      %v1543 = vadd.f32 %v1530, %v1039
      %v1544 = vadd.f32 %v1530, %v1042
      %v1545 = vadd.f32 %v1531, %v1047
      %v1546 = vadd.f32 %v1532, %v1050
      %v1547 = vadd.f32 %v1533, %v1055
      %v1548 = vadd.f32 %v1534, %v1058
      %v1549 = vadd.f32 %v1535, %v1063
      %v1550 = vadd.f32 %v1536, %v1066
      %v1551 = vadd.f32 %v1537, %v1071
      %v1552 = vadd.f32 %v1538, %v1074
      %v1553 = vadd.f32 %v1539, %v1079
      %v1554 = vadd.f32 %v1540, %v1082
      %v1555 = vadd.f32 %v1541, %v1087
      %v1556 = vadd.f32 %v1542, %v1090
      %v1557 = vadd.f32 %v1543, %v1095
      %v1558 = vadd.f32 %v1544, %v1098
      %v1559 = vmul.f32 %v1240, 2.0
      %v1560 = vmul.f32 %v1243, 2.0
      %v1561 = vmul.f32 %v1248, 2.0
      %v1562 = vmul.f32 %v1251, 2.0
      %v1563 = vmul.f32 %v1256, 2.0
      %v1564 = vmul.f32 %v1259, 2.0
      %v1565 = vmul.f32 %v1264, 2.0
      %v1566 = vmul.f32 %v1267, 2.0
      %v1567 = vmul.f32 %v1272, 2.0
      %v1568 = vmul.f32 %v1275, 2.0
      %v1569 = vmul.f32 %v1280, 2.0
      %v1570 = vmul.f32 %v1283, 2.0
      %v1571 = vmul.f32 %v1288, 2.0
      %v1572 = vmul.f32 %v1291, 2.0
      %v1573 = vsub.f32 %v1545, %v1559
      %v1574 = vsub.f32 %v1546, %v1560
      %v1575 = vsub.f32 %v1547, %v1561
      %v1576 = vsub.f32 %v1548, %v1562
      %v1577 = vsub.f32 %v1549, %v1563
      %v1578 = vsub.f32 %v1550, %v1564
      %v1579 = vsub.f32 %v1551, %v1565
      %v1580 = vsub.f32 %v1552, %v1566
      %v1581 = vsub.f32 %v1553, %v1567
      %v1582 = vsub.f32 %v1554, %v1568
      %v1583 = vsub.f32 %v1555, %v1569
      %v1584 = vsub.f32 %v1556, %v1570
      %v1585 = vsub.f32 %v1557, %v1571
      %v1586 = vsub.f32 %v1558, %v1572
      %v1587 = vadd.f32 %v1573, %v1325
      %v1588 = vadd.f32 %v1574, %v1325
      %v1589 = vadd.f32 %v1575, %v1325
      %v1590 = vadd.f32 %v1576, %v1325
      %v1591 = vadd.f32 %v1577, %v1325
      %v1592 = vadd.f32 %v1578, %v1325
      %v1593 = vadd.f32 %v1579, %v1325
      %v1594 = vadd.f32 %v1580, %v1325
      %v1595 = vadd.f32 %v1581, %v1325
      %v1596 = vadd.f32 %v1582, %v1325
      %v1597 = vadd.f32 %v1583, %v1325
      %v1598 = vadd.f32 %v1584, %v1325
      %v1599 = vadd.f32 %v1585, %v1325
      %v1600 = vadd.f32 %v1586, %v1325
      %v1601 = vmul.f32 %v1587, 0.0078125
      %v1602 = vmul.f32 %v1588, 0.0078125
      %v1603 = vmul.f32 %v1589, 0.0078125
      %v1604 = vmul.f32 %v1590, 0.0078125
      %v1605 = vmul.f32 %v1591, 0.0078125
      %v1606 = vmul.f32 %v1592, 0.0078125
      %v1607 = vmul.f32 %v1593, 0.0078125
      %v1608 = vmul.f32 %v1594, 0.0078125
      %v1609 = vmul.f32 %v1595, 0.0078125
      %v1610 = vmul.f32 %v1596, 0.0078125
      %v1611 = vmul.f32 %v1597, 0.0078125
      %v1612 = vmul.f32 %v1598, 0.0078125
      %v1613 = vmul.f32 %v1599, 0.0078125
      %v1614 = vmul.f32 %v1600, 0.0078125
      %v1615 = vmul.f32 %v1513, %v1601
      %v1616 = vmul.f32 %v1514, %v1602
      %v1617 = vmul.f32 %v1515, %v1603
      %v1618 = vmul.f32 %v1516, %v1604
      %v1619 = vmul.f32 %v1517, %v1605
      %v1620 = vmul.f32 %v1518, %v1606
      %v1621 = vmul.f32 %v1519, %v1607
      %v1622 = vmul.f32 %v1520, %v1608
      %v1623 = vmul.f32 %v1521, %v1609
      %v1624 = vmul.f32 %v1522, %v1610
      %v1625 = vmul.f32 %v1523, %v1611
      %v1626 = vmul.f32 %v1524, %v1612
      %v1627 = vmul.f32 %v1525, %v1613
      %v1628 = vmul.f32 %v1526, %v1614
      %1629 = vadd.xlane.f32.xlu0 %v1615
      %v1630 = vpop.xlane.xlu0 %1629
      %1631 = vadd.xlane.f32.xlu0 %v1616
      %v1632 = vpop.xlane.xlu0 %1631
      %1633 = vadd.xlane.f32.xlu0 %v1617
      %v1634 = vpop.xlane.xlu0 %1633
      %1635 = vadd.xlane.f32.xlu0 %v1618
      %v1636 = vpop.xlane.xlu0 %1635
      %1637 = vadd.xlane.f32.xlu0 %v1619
      %v1638 = vpop.xlane.xlu0 %1637
      %1639 = vadd.xlane.f32.xlu0 %v1620
      %v1640 = vpop.xlane.xlu0 %1639
      %1641 = vadd.xlane.f32.xlu0 %v1621
      %v1642 = vpop.xlane.xlu0 %1641
      %1643 = vadd.xlane.f32.xlu0 %v1622
      %v1644 = vpop.xlane.xlu0 %1643
      %1645 = vadd.xlane.f32.xlu0 %v1623
      %v1646 = vpop.xlane.xlu0 %1645
      %1647 = vadd.xlane.f32.xlu0 %v1624
      %v1648 = vpop.xlane.xlu0 %1647
      %1649 = vadd.xlane.f32.xlu0 %v1625
      %v1650 = vpop.xlane.xlu0 %1649
      %1651 = vadd.xlane.f32.xlu0 %v1626
      %v1652 = vpop.xlane.xlu0 %1651
      %1653 = vadd.xlane.f32.xlu0 %v1627
      %v1654 = vpop.xlane.xlu0 %1653
      %1655 = vadd.xlane.f32.xlu0 %v1628
      %v1656 = vpop.xlane.xlu0 %1655
      %v1657 = vmul.f32 %v1630, 0.5
      %v1658 = vmul.f32 %v1632, 0.5
      %v1659 = vmul.f32 %v1634, 0.5
      %v1660 = vmul.f32 %v1636, 0.5
      %v1661 = vmul.f32 %v1638, 0.5
      %v1662 = vmul.f32 %v1640, 0.5
      %v1663 = vmul.f32 %v1642, 0.5
      %v1664 = vmul.f32 %v1644, 0.5
      %v1665 = vmul.f32 %v1646, 0.5
      %v1666 = vmul.f32 %v1648, 0.5
      %v1667 = vmul.f32 %v1650, 0.5
      %v1668 = vmul.f32 %v1652, 0.5
      %v1669 = vmul.f32 %v1654, 0.5
      %v1670 = vmul.f32 %v1656, 0.5
      %1671 = vadd.xlane.f32.xlu0 %v577
      %v1672 = vpop.xlane.xlu0 %1671
      %1673 = vadd.xlane.f32.xlu0 %v581
      %v1674 = vpop.xlane.xlu0 %1673
      %1675 = vadd.xlane.f32.xlu0 %v587
      %v1676 = vpop.xlane.xlu0 %1675
      %1677 = vadd.xlane.f32.xlu0 %v591
      %v1678 = vpop.xlane.xlu0 %1677
      %1679 = vadd.xlane.f32.xlu0 %v597
      %v1680 = vpop.xlane.xlu0 %1679
      %1681 = vadd.xlane.f32.xlu0 %v601
      %v1682 = vpop.xlane.xlu0 %1681
      %1683 = vadd.xlane.f32.xlu0 %v607
      %v1684 = vpop.xlane.xlu0 %1683
      %1685 = vadd.xlane.f32.xlu0 %v611
      %v1686 = vpop.xlane.xlu0 %1685
      %1687 = vadd.xlane.f32.xlu0 %v617
      %v1688 = vpop.xlane.xlu0 %1687
      %1689 = vadd.xlane.f32.xlu0 %v621
      %v1690 = vpop.xlane.xlu0 %1689
      %1691 = vadd.xlane.f32.xlu0 %v627
      %v1692 = vpop.xlane.xlu0 %1691
      %1693 = vadd.xlane.f32.xlu0 %v631
      %v1694 = vpop.xlane.xlu0 %1693
      %1695 = vadd.xlane.f32.xlu0 %v637
      %v1696 = vpop.xlane.xlu0 %1695
      %1697 = vadd.xlane.f32.xlu0 %v641
      %v1698 = vpop.xlane.xlu0 %1697
      %v1699 = vmul.f32 %v1672, 0.0078125
      %v1700 = vmul.f32 %v1674, 0.0078125
      %v1701 = vmul.f32 %v1676, 0.0078125
      %v1702 = vmul.f32 %v1678, 0.0078125
      %v1703 = vmul.f32 %v1680, 0.0078125
      %v1704 = vmul.f32 %v1682, 0.0078125
      %v1705 = vmul.f32 %v1684, 0.0078125
      %v1706 = vmul.f32 %v1686, 0.0078125
      %v1707 = vmul.f32 %v1688, 0.0078125
      %v1708 = vmul.f32 %v1690, 0.0078125
      %v1709 = vmul.f32 %v1692, 0.0078125
      %v1710 = vmul.f32 %v1694, 0.0078125
      %v1711 = vmul.f32 %v1696, 0.0078125
      %v1712 = vmul.f32 %v1698, 0.0078125
      %v1713 = vadd.f32 %v1699, 1.0
      %v1714 = vadd.f32 %v1700, 1.0
      %v1715 = vadd.f32 %v1701, 1.0
      %v1716 = vadd.f32 %v1702, 1.0
      %v1717 = vadd.f32 %v1703, 1.0
      %v1718 = vadd.f32 %v1704, 1.0
      %v1719 = vadd.f32 %v1705, 1.0
      %v1720 = vadd.f32 %v1706, 1.0
      %v1721 = vadd.f32 %v1707, 1.0
      %v1722 = vadd.f32 %v1708, 1.0
      %v1723 = vadd.f32 %v1709, 1.0
      %v1724 = vadd.f32 %v1710, 1.0
      %v1725 = vadd.f32 %v1711, 1.0
      %v1726 = vadd.f32 %v1712, 1.0
      %v1727 = vmul.f32 %v1713, 0.5
      %v1728 = vmul.f32 %v1714, 0.5
      %v1729 = vmul.f32 %v1715, 0.5
      %v1730 = vmul.f32 %v1716, 0.5
      %v1731 = vmul.f32 %v1717, 0.5
      %v1732 = vmul.f32 %v1718, 0.5
      %v1733 = vmul.f32 %v1719, 0.5
      %v1734 = vmul.f32 %v1720, 0.5
      %v1735 = vmul.f32 %v1721, 0.5
      %v1736 = vmul.f32 %v1722, 0.5
      %v1737 = vmul.f32 %v1723, 0.5
      %v1738 = vmul.f32 %v1724, 0.5
      %v1739 = vmul.f32 %v1725, 0.5
      %v1740 = vmul.f32 %v1726, 0.5
      %v1741 = vsub.f32 %v1657, %v1727
      %v1742 = vsub.f32 %v1658, %v1728
      %v1743 = vsub.f32 %v1659, %v1729
      %v1744 = vsub.f32 %v1660, %v1730
      %v1745 = vsub.f32 %v1661, %v1731
      %v1746 = vsub.f32 %v1662, %v1732
      %v1747 = vsub.f32 %v1663, %v1733
      %v1748 = vsub.f32 %v1664, %v1734
      %v1749 = vsub.f32 %v1665, %v1735
      %v1750 = vsub.f32 %v1666, %v1736
      %v1751 = vsub.f32 %v1667, %v1737
      %v1752 = vsub.f32 %v1668, %v1738
      %v1753 = vsub.f32 %v1669, %v1739
      %v1754 = vsub.f32 %v1670, %v1740
      %v1769 = vlaneseq
      %v1770 = vshrl.u32 %v1769, 7
      %v1771 = vsub.s32 %v1355, %v1770
      %v1772 = vrot.slane %v1741, %v1771
      %v1773 = vadd.s32 %v1355, 4294967288
      %v1774 = vlaneseq
      %v1775 = vshrl.u32 %v1774, 7
      %v1776 = vsub.s32 %v1773, %v1775
      %v1777 = vrot.slane %v1742, %v1776
      %vm1778 = vcmask 130112
      %v1779 = vsel %vm1778, %v1777, %v1772
      %v1780 = vadd.s32 %v1355, 4294967280
      %v1781 = vlaneseq
      %v1782 = vshrl.u32 %v1781, 7
      %v1783 = vsub.s32 %v1780, %v1782
      %v1784 = vrot.slane %v1743, %v1783
      %vm1785 = vcmask 195712
      %v1786 = vsel %vm1785, %v1784, %v1779
      %v1787 = vadd.s32 %v1355, 4294967272
      %v1788 = vlaneseq
      %v1789 = vshrl.u32 %v1788, 7
      %v1790 = vsub.s32 %v1787, %v1789
      %v1791 = vrot.slane %v1744, %v1790
      %vm1792 = vcmask 261312
      %v1793 = vsel %vm1792, %v1791, %v1786
      %v1794 = vadd.s32 %v1355, 4294967264
      %v1795 = vlaneseq
      %v1796 = vshrl.u32 %v1795, 7
      %v1797 = vsub.s32 %v1794, %v1796
      %v1798 = vrot.slane %v1745, %v1797
      %vm1799 = vcmask 326912
      %v1800 = vsel %vm1799, %v1798, %v1793
      %v1801 = vadd.s32 %v1355, 4294967256
      %v1802 = vlaneseq
      %v1803 = vshrl.u32 %v1802, 7
      %v1804 = vsub.s32 %v1801, %v1803
      %v1805 = vrot.slane %v1746, %v1804
      %vm1806 = vcmask 392512
      %v1807 = vsel %vm1806, %v1805, %v1800
      %v1808 = vadd.s32 %v1355, 4294967248
      %v1809 = vlaneseq
      %v1810 = vshrl.u32 %v1809, 7
      %v1811 = vsub.s32 %v1808, %v1810
      %v1812 = vrot.slane %v1747, %v1811
      %vm1813 = vcmask 458112
      %v1814 = vsel %vm1813, %v1812, %v1807
      %v1815 = vadd.s32 %v1355, 4294967240
      %v1816 = vlaneseq
      %v1817 = vshrl.u32 %v1816, 7
      %v1818 = vsub.s32 %v1815, %v1817
      %v1819 = vrot.slane %v1748, %v1818
      %vm1820 = vcmask 523712
      %v1821 = vsel %vm1820, %v1819, %v1814
      %v1822 = vadd.s32 %v1355, 4294967232
      %v1823 = vlaneseq
      %v1824 = vshrl.u32 %v1823, 7
      %v1825 = vsub.s32 %v1822, %v1824
      %v1826 = vrot.slane %v1749, %v1825
      %vm1827 = vcmask 589312
      %v1828 = vsel %vm1827, %v1826, %v1821
      %v1829 = vadd.s32 %v1355, 4294967224
      %v1830 = vlaneseq
      %v1831 = vshrl.u32 %v1830, 7
      %v1832 = vsub.s32 %v1829, %v1831
      %v1833 = vrot.slane %v1750, %v1832
      %vm1834 = vcmask 654912
      %v1835 = vsel %vm1834, %v1833, %v1828
      %v1836 = vadd.s32 %v1355, 4294967216
      %v1837 = vlaneseq
      %v1838 = vshrl.u32 %v1837, 7
      %v1839 = vsub.s32 %v1836, %v1838
      %v1840 = vrot.slane %v1751, %v1839
      %vm1841 = vcmask 720512
      %v1842 = vsel %vm1841, %v1840, %v1835
      %v1843 = vadd.s32 %v1355, 4294967208
      %v1844 = vlaneseq
      %v1845 = vshrl.u32 %v1844, 7
      %v1846 = vsub.s32 %v1843, %v1845
      %v1847 = vrot.slane %v1752, %v1846
      %vm1848 = vcmask 786112
      %v1849 = vsel %vm1848, %v1847, %v1842
      %v1850 = vadd.s32 %v1355, 4294967200
      %v1851 = vlaneseq
      %v1852 = vshrl.u32 %v1851, 7
      %v1853 = vsub.s32 %v1850, %v1852
      %v1854 = vrot.slane %v1753, %v1853
      %vm1855 = vcmask 851712
      %v1856 = vsel %vm1855, %v1854, %v1849
      %v1857 = vadd.s32 %v1355, 4294967192
      %v1858 = vlaneseq
      %v1859 = vshrl.u32 %v1858, 7
      %v1860 = vsub.s32 %v1857, %v1859
      %v1861 = vrot.slane %v1754, %v1860
      %vm1862 = vcmask 917312
      %v1863 = vsel %vm1862, %v1861, %v1856
      %vm1865 = vcmask 909312
      %1866 = vst.msk [vmem:[%s371] sm:$0x1] %vm1865, %v1863
      %s1867 = smul.u32 %s21, 112
      %v1868 = vlaneseq
      %v1869 = vshrl.u32 %v1868, 7
      %v1870 = vadd.s32 %v1869, 8
      %v1871 = vadd.s32 %v1869, 16
      %v1872 = vadd.s32 %v1869, 24
      %v1873 = vadd.s32 %v1869, 32
      %v1874 = vadd.s32 %v1869, 40
      %v1875 = vadd.s32 %v1869, 48
      %v1876 = vadd.s32 %v1869, 56
      %v1877 = vadd.s32 %v1869, 64
      %v1878 = vadd.s32 %v1869, 72
      %v1879 = vadd.s32 %v1869, 80
      %v1880 = vadd.s32 %v1869, 88
      %v1881 = vadd.s32 %v1869, 96
      %v1882 = vadd.s32 %v1869, 104
      %v1883 = vstv %s1867
      %v1884 = vadd.s32 %v1883, %v1869
      %v1885 = vadd.s32 %v1883, %v1870
      %v1886 = vadd.s32 %v1883, %v1871
      %v1887 = vadd.s32 %v1883, %v1872
      %v1888 = vadd.s32 %v1883, %v1873
      %v1889 = vadd.s32 %v1883, %v1874
      %v1890 = vadd.s32 %v1883, %v1875
      %v1891 = vadd.s32 %v1883, %v1876
      %v1892 = vadd.s32 %v1883, %v1877
      %v1893 = vadd.s32 %v1883, %v1878
      %v1894 = vadd.s32 %v1883, %v1879
      %v1895 = vadd.s32 %v1883, %v1880
      %v1896 = vadd.s32 %v1883, %v1881
      %v1897 = vadd.s32 %v1883, %v1882
      %vm1898 = vcmp.lt.s32.totalorder %v1884, 200
      %vm1899 = vcmp.lt.s32.totalorder %v1885, 200
      %vm1900 = vcmp.lt.s32.totalorder %v1886, 200
      %vm1901 = vcmp.lt.s32.totalorder %v1887, 200
      %vm1902 = vcmp.lt.s32.totalorder %v1888, 200
      %vm1903 = vcmp.lt.s32.totalorder %v1889, 200
      %vm1904 = vcmp.lt.s32.totalorder %v1890, 200
      %vm1905 = vcmp.lt.s32.totalorder %v1891, 200
      %vm1906 = vcmp.lt.s32.totalorder %v1892, 200
      %vm1907 = vcmp.lt.s32.totalorder %v1893, 200
      %vm1908 = vcmp.lt.s32.totalorder %v1894, 200
      %vm1909 = vcmp.lt.s32.totalorder %v1895, 200
      %vm1910 = vcmp.lt.s32.totalorder %v1896, 200
      %vm1911 = vcmp.lt.s32.totalorder %v1897, 200
      %v1912 = vsel %vm1898, 1, 0
      %v1913 = vsel %vm1899, 1, 0
      %v1914 = vsel %vm1900, 1, 0
      %v1915 = vsel %vm1901, 1, 0
      %v1916 = vsel %vm1902, 1, 0
      %v1917 = vsel %vm1903, 1, 0
      %v1918 = vsel %vm1904, 1, 0
      %v1919 = vsel %vm1905, 1, 0
      %v1920 = vsel %vm1906, 1, 0
      %v1921 = vsel %vm1907, 1, 0
      %v1922 = vsel %vm1908, 1, 0
      %v1923 = vsel %vm1909, 1, 0
      %v1924 = vsel %vm1910, 1, 0
      %v1925 = vsel %vm1911, 1, 0
      %v1926 = vcvt.s32.f32 %v1912
      %v1927 = vcvt.s32.f32 %v1913
      %v1928 = vcvt.s32.f32 %v1914
      %v1929 = vcvt.s32.f32 %v1915
      %v1930 = vcvt.s32.f32 %v1916
      %v1931 = vcvt.s32.f32 %v1917
      %v1932 = vcvt.s32.f32 %v1918
      %v1933 = vcvt.s32.f32 %v1919
      %v1934 = vcvt.s32.f32 %v1920
      %v1935 = vcvt.s32.f32 %v1921
      %v1936 = vcvt.s32.f32 %v1922
      %v1937 = vcvt.s32.f32 %v1923
      %v1938 = vcvt.s32.f32 %v1924
      %v1939 = vcvt.s32.f32 %v1925
      %v1940 = vmul.f32 %v1513, %v1926
      %v1941 = vmul.f32 %v1514, %v1927
      %v1942 = vmul.f32 %v1515, %v1928
      %v1943 = vmul.f32 %v1516, %v1929
      %v1944 = vmul.f32 %v1517, %v1930
      %v1945 = vmul.f32 %v1518, %v1931
      %v1946 = vmul.f32 %v1519, %v1932
      %v1947 = vmul.f32 %v1520, %v1933
      %v1948 = vmul.f32 %v1521, %v1934
      %v1949 = vmul.f32 %v1522, %v1935
      %v1950 = vmul.f32 %v1523, %v1936
      %v1951 = vmul.f32 %v1524, %v1937
      %v1952 = vmul.f32 %v1525, %v1938
      %v1953 = vmul.f32 %v1526, %v1939
      %v1954 = vadd.f32 %v1940, %v1941
      %v1955 = vadd.f32 %v1954, %v1942
      %v1956 = vadd.f32 %v1955, %v1943
      %v1957 = vadd.f32 %v1956, %v1944
      %v1958 = vadd.f32 %v1957, %v1945
      %v1959 = vadd.f32 %v1958, %v1946
      %v1960 = vadd.f32 %v1959, %v1947
      %v1961 = vadd.f32 %v1960, %v1948
      %v1962 = vadd.f32 %v1961, %v1949
      %v1963 = vadd.f32 %v1962, %v1950
      %v1964 = vadd.f32 %v1963, %v1951
      %v1965 = vadd.f32 %v1964, %v1952
      %v1966 = vadd.f32 %v1965, %v1953
      %v1967 = vrot.slane %v1966, 4
      %v1968 = vadd.f32 %v1966, %v1967
      %v1969 = vrot.slane %v1968, 2
      %v1970 = vadd.f32 %v1968, %v1969
      %v1971 = vrot.slane %v1970, 1
      %v1972 = vadd.f32 %v1970, %v1971
      %1973 = vst [vmem:[%s374] sm:$0x1] %v1972
      %s1974 = smul.u32 14, %s21
      %p1975 = scmp.lt.s32.totalorder %s1974, 27
      %s1976 = scalar_select %p1975, %s1974, 27
      %s1977 = smul.addr %s1976, 8
      %s1978 = scalar_lea.vmem %s7, %s1977
      %p1979 = scmp.lt.s32.totalorder %s21, 1
      %s1980 = scalar_select %p1979, %s21, 1
      %s1981 = scalar_lea.vmem %s8, %s1980
      %p1982 = scmp.lt.s32.totalorder %s21, 1
      %s1983 = scalar_select %p1982, %s21, 1
      %s1984 = scalar_lea.vmem %s9, %s1983
      // Predicated region
      $region49: #{latent_gaussian_mixture.1} parent=47 // pred_check
        %p1985 = pneg %p196
      $region50: #{latent_gaussian_mixture.1} parent=47 // pred_check_branch
        %1987 = sbr.rel (%p1985) target = $region52
      $region51: #{latent_gaussian_mixture.1} parent=47 // pred_region
        %s1988 = smul.u32 14, %s21
      $region52: #{latent_gaussian_mixture.1} parent=47 // pred_fallthru
        _
      // Predicated region
      $region53: #{latent_gaussian_mixture.1} parent=47 // pred_check
        %p1989 = pneg %p222
      $region54: #{latent_gaussian_mixture.1} parent=47 // pred_check_branch
        %1991 = sbr.rel (%p1989) target = $region56
      $region55: #{latent_gaussian_mixture.1} parent=47 // pred_region
        _
      $region56: #{latent_gaussian_mixture.1} parent=47 // pred_fallthru
        _
      // Predicated region
      $region57: #{latent_gaussian_mixture.1} parent=47 // pred_check
        %p1992 = pneg %p248
      $region58: #{latent_gaussian_mixture.1} parent=47 // pred_check_branch
        %1994 = sbr.rel (%p1992) target = $region60
      $region59: #{latent_gaussian_mixture.1} parent=47 // pred_region
        _
      $region60: #{latent_gaussian_mixture.1} parent=47 // pred_fallthru
        _
    $region48: #{latent_gaussian_mixture.1} parent=5 // pred_fallthru
      _
    %p1995 = scmp.le.s32.totalorder 2, %s16
    // Predicated region
    $region61: #{latent_gaussian_mixture.1} parent=5 // pred_check
      %p1996 = pneg %p1995
    $region62: #{latent_gaussian_mixture.1} parent=5 // pred_check_branch
      %1998 = sbr.rel (%p1996) target = $region64
    $region63: #{latent_gaussian_mixture.1} parent=5 // pred_region
      %s1999 = ssub.s32 %s16, 2
      // Predicated region
      $region65: #{latent_gaussian_mixture.1} parent=63 // pred_check
        %p2000 = pneg %p202
      $region66: #{latent_gaussian_mixture.1} parent=63 // pred_check_branch
        %2002 = sbr.rel (%p2000) target = $region68
      $region67: #{latent_gaussian_mixture.1} parent=63 // pred_region
        %s2003 = smul.u32 14, %s22
        %p2004 = scmp.lt.s32.totalorder %s2003, 27
        %s2005 = scalar_select %p2004, %s2003, 27
        %s2006 = smul.addr %s2005, 8
        %s2007 = scalar_lea.vmem %s7, %s2006
      $region68: #{latent_gaussian_mixture.1} parent=63 // pred_fallthru
        _
      // Predicated region
      $region69: #{latent_gaussian_mixture.1} parent=63 // pred_check
        %p2008 = pneg %p228
      $region70: #{latent_gaussian_mixture.1} parent=63 // pred_check_branch
        %2010 = sbr.rel (%p2008) target = $region72
      $region71: #{latent_gaussian_mixture.1} parent=63 // pred_region
        %p2011 = scmp.lt.s32.totalorder %s22, 1
        %s2012 = scalar_select %p2011, %s22, 1
        %s2013 = scalar_lea.vmem %s8, %s2012
      $region72: #{latent_gaussian_mixture.1} parent=63 // pred_fallthru
        _
      // Predicated region
      $region73: #{latent_gaussian_mixture.1} parent=63 // pred_check
        %p2014 = pneg %p254
      $region74: #{latent_gaussian_mixture.1} parent=63 // pred_check_branch
        %2016 = sbr.rel (%p2014) target = $region76
      $region75: #{latent_gaussian_mixture.1} parent=63 // pred_region
        %p2017 = scmp.lt.s32.totalorder %s22, 1
        %s2018 = scalar_select %p2017, %s22, 1
        %s2019 = scalar_lea.vmem %s9, %s2018
      $region76: #{latent_gaussian_mixture.1} parent=63 // pred_fallthru
        _
    $region64: #{latent_gaussian_mixture.1} parent=5 // pred_fallthru
      _
  $region6: #{latent_gaussian_mixture.1} parent=0 // loop_footer
    %s20 = sadd.s32 1, %s16
  $region7: #{latent_gaussian_mixture.1} parent=0 // loop_footer_branch
    %15 = sbr.rel target = $region3
  $region8: #{latent_gaussian_mixture.1} parent=0 // loop_exit
    _

</llo_original>
